<compile_context>
chip_gen: v6e
topology: v6e:2x2x1
jax: 0.10.0
libtpu: 0.0.40
codegen_flags: <defaults>
</compile_context>

<pallas_src>
import functools

import numpy as np
import jax
import jax.numpy as jnp
from jax.experimental import pallas as pl
from jax.experimental.pallas import tpu as pltpu


# --------------------------- host-side constant matrices --------------------------- #

def _make_pad_matrix(H, W, Lp):
    """(H*W, Lp) 0/1 scatter: row-major valid position -> padded-flat position (zero ring)."""
    Wp = W + 2
    P = np.zeros((H * W, Lp), np.float32)
    hw = np.arange(H * W)
    P[hw, (hw // W + 1) * Wp + (hw % W + 1)] = 1.0
    return jnp.asarray(P, dtype=jnp.bfloat16)


def _make_extract_matrix(H, W, stride):
    """(L, Ho*Wo) 0/1 gather: shifted-flat stride-1 conv coords -> valid (strided) outputs."""
    Wp = W + 2
    L = H * Wp - 2
    Ho = (H - 1) // stride + 1
    Wo = (W - 1) // stride + 1
    src = np.arange(L)[:, None]
    dst = np.arange(Ho * Wo)[None, :]
    want = (stride * (dst // Wo)) * Wp + stride * (dst % Wo)
    return jnp.asarray((src == want).astype(np.float32), dtype=jnp.bfloat16)


# ------------------------------- in-kernel helpers -------------------------------- #

def _bf16(v):
    return v if v.dtype == jnp.bfloat16 else v.astype(jnp.bfloat16)


def _mxu(a, b):
    """Single-pass bf16 MXU matmul, f32 accumulation (cast only if not already bf16)."""
    return jnp.dot(_bf16(a), _bf16(b), preferred_element_type=jnp.float32)


def _dw3x3(xpf, wd, bd, extract, H, W):
    """3x3 depthwise conv (pad=1; stride folded into `extract`) on padded-flat input.

    xpf    : (C, Lp) f32 padded-flat activation with an exact zero ring (and zero tail).
    wd     : (C, 9) f32 tap-major weights (k = 3*dy + dx);  bd: (C, 1) f32 bias.
    extract: (L, Ho*Wo) bf16 host-precomputed 0/1 selection matrix.
    Returns (C, Ho*Wo) f32.
    """
    Wp = W + 2
    L = H * Wp - 2
    C = xpf.shape[0]
    acc = None
    # TODO(synk): if the Mosaic dump shows these 9 static slices materializing VMEM copies,
    # switch to 3 row rolls + 3 lane sub-shifts via pltpu.roll (XLU slot) instead.
    for dy in range(3):
        for dx in range(3):
            s = dy * Wp + dx
            k = 3 * dy + dx
            t = jax.lax.slice(xpf, (0, s), (C, s + L)) * wd[:, k:k + 1]
            acc = t if acc is None else acc + t
    return _mxu(acc, extract) + bd


# ------------------------------------ kernels -------------------------------------- #

def _unit_bm1_kernel(x1_ref, x2_ref, p_ref, e_ref,
                     w0_ref, b0_ref, wd_ref, bd_ref, w2_ref, b2_ref,
                     o_ref, *, H, W):
    # benchmodel=1, stride=1: out channel 2i = x1[i] (pass-through), 2i+1 = branch2(x2)[i]
    P, E = p_ref[...], e_ref[...]
    w0, b0 = w0_ref[...], b0_ref[...]
    wd, bd = wd_ref[...], bd_ref[...]
    w2, b2 = w2_ref[...], b2_ref[...]
    for i in range(x2_ref.shape[0]):                          # images in this grid step
        a = jnp.maximum(_mxu(w0, x2_ref[i]) + b0, 0.0)        # (C1, HW)  1x1 + ReLU (unpadded)
        ap = _mxu(a, P)                                       # (C1, Lp)  inject exact zero ring
        z = _dw3x3(ap, wd, bd, E, H, W)                       # (C1, M)   3x3 depthwise
        u = jnp.maximum(_mxu(w2, z) + b2, 0.0)                # (C1, M)   1x1 + ReLU
        o_ref[i] = jnp.concatenate([x1_ref[i], u], axis=-1)   # single lane-dense store


def _unit_bm2_kernel(x_ref, p_ref, e_ref,
                     wd1_ref, bd1_ref, w1_ref, b1_ref,
                     w0_ref, b0_ref, wd2_ref, bd2_ref, w2_ref, b2_ref,
                     o_ref, *, H, W):
    # benchmodel=2: out channel 2i = branch1(x)[i], 2i+1 = branch2(x)[i]
    P, E = p_ref[...], e_ref[...]
    wd1, bd1 = wd1_ref[...], bd1_ref[...]
    w1, b1 = w1_ref[...], b1_ref[...]
    w0, b0 = w0_ref[...], b0_ref[...]
    wd2, bd2 = wd2_ref[...], bd2_ref[...]
    w2, b2 = w2_ref[...], b2_ref[...]
    for i in range(x_ref.shape[0]):
        x = x_ref[i]                                          # (Cin, HW) bf16
        xp = _mxu(x, P)                                       # (Cin, Lp) zero-ring padded
        # branch 1: dw3x3(stride) -> 1x1 -> ReLU
        z1 = _dw3x3(xp, wd1, bd1, E, H, W)                    # (Cin, M)
        y1 = jnp.maximum(_mxu(w1, z1) + b1, 0.0)              # (C1, M)
        # branch 2: 1x1 -> ReLU -> dw3x3(stride) -> 1x1 -> ReLU
        a = jnp.maximum(_mxu(w0, x) + b0, 0.0)                # (C1, HW)
        ap = _mxu(a, P)                                       # (C1, Lp)
        z2 = _dw3x3(ap, wd2, bd2, E, H, W)                    # (C1, M)
        y2 = jnp.maximum(_mxu(w2, z2) + b2, 0.0)              # (C1, M)
        o_ref[i] = jnp.concatenate([y1, y2], axis=-1)         # single lane-dense (C1, 2M) store


# ------------------------------------ wrapper --------------------------------------- #

def _wspec(shape):
    nd = len(shape)
    return pl.BlockSpec(shape, lambda n, _nd=nd: (0,) * _nd)


def _pick_images_per_step(N, cap=8):
    """Largest divisor of N (<= cap) that still leaves >=2 grid steps (v7x has 2 TCs)."""
    if N < 2:
        return 1
    best = 1
    for d in range(1, min(cap, N // 2) + 1):
        if N % d == 0:
            best = d
    return best


def inverted_residual_forward(x_nchw, params, *, benchmodel, stride):
    N, C, H, W = x_nchw.shape
    HW = H * W
    HpWp = (H + 2) * (W + 2)
    Lp = ((HpWp + 127) // 128) * 128          # pad-matmul output padded to full lane tiles
    L = H * (W + 2) - 2
    Ho = (H - 1) // stride + 1
    Wo = (W - 1) // stride + 1
    M = Ho * Wo
    nb = _pick_images_per_step(N)
    steps = N // nb
    cparams = pltpu.CompilerParams(dimension_semantics=("parallel",))

    # Host-precomputed constant 0/1 matrices (bf16), shared by both branches.
    # TODO(synk): at large feature maps (28x28 / 56x56) the extract matrix is O(H^2*W^2);
    # switch to per-row strided extraction at the output store instead of a matmul there.
    P = _make_pad_matrix(H, W, Lp)
    E = _make_extract_matrix(H, W, stride)

    bf = lambda a, s: a.reshape(s).astype(jnp.bfloat16)
    f32 = lambda a, s: a.reshape(s).astype(jnp.float32)

    if benchmodel == 1:
        assert stride == 1, "benchmodel=1 requires stride=1"
        C1 = C // 2
        x1 = x_nchw[:, :C1].reshape(N, C1, HW).astype(jnp.float32)   # exact pass-through
        x2 = x_nchw[:, C1:].reshape(N, C1, HW).astype(jnp.bfloat16)
        w0, b0 = bf(params["b2_w0"], (C1, C1)), f32(params["b2_b0"], (C1, 1))
        wd, bd = f32(params["b2_w1"], (C1, 9)), f32(params["b2_b1"], (C1, 1))
        w2, b2 = bf(params["b2_w2"], (C1, C1)), f32(params["b2_b2"], (C1, 1))
        out = pl.pallas_call(
            functools.partial(_unit_bm1_kernel, H=H, W=W),
            out_shape=jax.ShapeDtypeStruct((N, C1, 2 * M), jnp.float32),
            grid=(steps,),
            in_specs=[
                pl.BlockSpec((nb, C1, HW), lambda n: (n, 0, 0)),
                pl.BlockSpec((nb, C1, HW), lambda n: (n, 0, 0)),
                _wspec((HW, Lp)), _wspec((L, M)),
                _wspec((C1, C1)), _wspec((C1, 1)),
                _wspec((C1, 9)), _wspec((C1, 1)),
                _wspec((C1, C1)), _wspec((C1, 1)),
            ],
            out_specs=pl.BlockSpec((nb, C1, 2 * M), lambda n: (n, 0, 0)),
            compiler_params=cparams,
        )(x1, x2, P, E, w0, b0, wd, bd, w2, b2)
        # (N, C1, 2, Ho*Wo) contiguous -> channel-shuffled NCHW via metadata reshape only
        return out.reshape(N, 2 * C1, Ho, Wo)

    elif benchmodel == 2:
        Cin = C
        C1 = params["b1_w1"].shape[0]            # oup_inc
        x = x_nchw.reshape(N, Cin, HW).astype(jnp.bfloat16)
        wd1, bd1 = f32(params["b1_w0"], (Cin, 9)), f32(params["b1_b0"], (Cin, 1))
        w1, b1 = bf(params["b1_w1"], (C1, Cin)), f32(params["b1_b1"], (C1, 1))
        w0, b0 = bf(params["b2_w0"], (C1, Cin)), f32(params["b2_b0"], (C1, 1))
        wd2, bd2 = f32(params["b2_w1"], (C1, 9)), f32(params["b2_b1"], (C1, 1))
        w2, b2 = bf(params["b2_w2"], (C1, C1)), f32(params["b2_b2"], (C1, 1))
        out = pl.pallas_call(
            functools.partial(_unit_bm2_kernel, H=H, W=W),
            out_shape=jax.ShapeDtypeStruct((N, C1, 2 * M), jnp.float32),
            grid=(steps,),
            in_specs=[
                pl.BlockSpec((nb, Cin, HW), lambda n: (n, 0, 0)),
                _wspec((HW, Lp)), _wspec((L, M)),
                _wspec((Cin, 9)), _wspec((Cin, 1)),
                _wspec((C1, Cin)), _wspec((C1, 1)),
                _wspec((C1, Cin)), _wspec((C1, 1)),
                _wspec((C1, 9)), _wspec((C1, 1)),
                _wspec((C1, C1)), _wspec((C1, 1)),
            ],
            out_specs=pl.BlockSpec((nb, C1, 2 * M), lambda n: (n, 0, 0)),
            compiler_params=cparams,
        )(x, P, E, wd1, bd1, w1, b1, w0, b0, wd2, bd2, w2, b2)
        return out.reshape(N, 2 * C1, Ho, Wo)
    else:
        raise ValueError("benchmodel must be 1 or 2")


# ------------------------------- pure-JAX reference --------------------------------- #

def _conv_ref(x, w, b, stride, padding, groups):
    y = jax.lax.conv_general_dilated(
        x, w, window_strides=(stride, stride),
        padding=((padding, padding), (padding, padding)),
        dimension_numbers=("NCHW", "OIHW", "NCHW"),
        feature_group_count=groups,
        precision=jax.lax.Precision.HIGHEST)
    return y + b.reshape(1, -1, 1, 1)


def _channel_shuffle_nchw(x, groups):
    N, C, H, W = x.shape
    x = x.reshape(N, groups, C // groups, H, W)
    x = jnp.transpose(x, (0, 2, 1, 3, 4))
    return x.reshape(N, C, H, W)


def reference_forward(x, params, *, benchmodel, stride):
    relu = lambda v: jnp.maximum(v, 0.0)
    if benchmodel == 1:
        C = x.shape[1]
        x1, x2 = x[:, :C // 2], x[:, C // 2:]
        y = relu(_conv_ref(x2, params["b2_w0"], params["b2_b0"], 1, 0, 1))
        y = _conv_ref(y, params["b2_w1"], params["b2_b1"], stride, 1, y.shape[1])
        y = relu(_conv_ref(y, params["b2_w2"], params["b2_b2"], 1, 0, 1))
        out = jnp.concatenate([x1, y], axis=1)
    else:
        y1 = _conv_ref(x, params["b1_w0"], params["b1_b0"], stride, 1, x.shape[1])
        y1 = relu(_conv_ref(y1, params["b1_w1"], params["b1_b1"], 1, 0, 1))
        y2 = relu(_conv_ref(x, params["b2_w0"], params["b2_b0"], 1, 0, 1))
        y2 = _conv_ref(y2, params["b2_w1"], params["b2_b1"], stride, 1, y2.shape[1])
        y2 = relu(_conv_ref(y2, params["b2_w2"], params["b2_b2"], 1, 0, 1))
        out = jnp.concatenate([y1, y2], axis=1)
    return _channel_shuffle_nchw(out, 2)


# ------------------------------- parameter init -------------------------------------- #

def init_params(key, inp, oup, benchmodel):
    # TODO(synk): the original module loads weights from JSON files (read_json/set_weights);
    # here parameters are deterministically random-initialized instead.
    oup_inc = oup // 2
    ks = jax.random.split(key, 10)
    w = lambda k, s: (0.1 * jax.random.normal(k, s)).astype(jnp.float32)
    p = {}
    if benchmodel == 1:
        p["b2_w0"] = w(ks[0], (oup_inc, oup_inc, 1, 1)); p["b2_b0"] = w(ks[1], (oup_inc,))
        p["b2_w1"] = w(ks[2], (oup_inc, 1, 3, 3));       p["b2_b1"] = w(ks[3], (oup_inc,))
        p["b2_w2"] = w(ks[4], (oup_inc, oup_inc, 1, 1)); p["b2_b2"] = w(ks[5], (oup_inc,))
    else:
        p["b1_w0"] = w(ks[0], (inp, 1, 3, 3));           p["b1_b0"] = w(ks[1], (inp,))
        p["b1_w1"] = w(ks[2], (oup_inc, inp, 1, 1));     p["b1_b1"] = w(ks[3], (oup_inc,))
        p["b2_w0"] = w(ks[4], (oup_inc, inp, 1, 1));     p["b2_b0"] = w(ks[5], (oup_inc,))
        p["b2_w1"] = w(ks[6], (oup_inc, 1, 3, 3));       p["b2_b1"] = w(ks[7], (oup_inc,))
        p["b2_w2"] = w(ks[8], (oup_inc, oup_inc, 1, 1)); p["b2_b2"] = w(ks[9], (oup_inc,))
    return p


# --------------------------------------- main ----------------------------------------- #

if __name__ == "__main__":
    key = jax.random.PRNGKey(0)
    k1, k2, kx1, kx2 = jax.random.split(key, 4)

    # benchmodel=1 (basic unit, stride=1): inp = oup = 32, x: (2, 32, 16, 16)
    p1 = init_params(k1, 32, 32, 1)
    x1_in = jax.random.normal(kx1, (2, 32, 16, 16), dtype=jnp.float32)
    fwd1 = jax.jit(functools.partial(inverted_residual_forward, benchmodel=1, stride=1))
    out1 = jax.block_until_ready(fwd1(x1_in, p1))
    assert out1.shape == (2, 32, 16, 16)
    ref1 = reference_forward(x1_in, p1, benchmodel=1, stride=1)
    np.testing.assert_allclose(np.asarray(out1), np.asarray(ref1), atol=2e-2, rtol=2e-2)

    # benchmodel=2 (downsampling unit, stride=2): inp=16, oup=32, x: (2, 16, 16, 16)
    p2 = init_params(k2, 16, 32, 2)
    x2_in = jax.random.normal(kx2, (2, 16, 16, 16), dtype=jnp.float32)
    fwd2 = jax.jit(functools.partial(inverted_residual_forward, benchmodel=2, stride=2))
    out2 = jax.block_until_ready(fwd2(x2_in, p2))
    assert out2.shape == (2, 32, 8, 8)
    ref2 = reference_forward(x2_in, p2, benchmodel=2, stride=2)
    np.testing.assert_allclose(np.asarray(out2), np.asarray(ref2), atol=2e-2, rtol=2e-2)

    print("KERNEL_OK")
</pallas_src>

<mosaic_0001>
module attributes {stable_mosaic.version = 11 : i64} {
  func.func @_unit_bm1_kernel(%arg0: i32, %arg1: memref<1x16x256xf32, #tpu.memory_space<vmem>>, %arg2: memref<1x16x256xbf16, #tpu.memory_space<vmem>>, %arg3: memref<256x384xbf16, #tpu.memory_space<vmem>>, %arg4: memref<286x256xbf16, #tpu.memory_space<vmem>>, %arg5: memref<16x16xbf16, #tpu.memory_space<vmem>>, %arg6: memref<16x1xf32, #tpu.memory_space<vmem>>, %arg7: memref<16x9xf32, #tpu.memory_space<vmem>>, %arg8: memref<16x1xf32, #tpu.memory_space<vmem>>, %arg9: memref<16x16xbf16, #tpu.memory_space<vmem>>, %arg10: memref<16x1xf32, #tpu.memory_space<vmem>>, %arg11: memref<1x16x512xf32, #tpu.memory_space<vmem>>) attributes {dimension_semantics = [#tpu.dimension_semantics<parallel>], iteration_bounds = array<i64: 2>, scalar_prefetch = 0 : i64, scratch_operands = 0 : i64, tpu.core_type = #tpu.core_type<tc>, window_params = [{transform_indices = @transform_0, window_bounds = array<i64: 1, 16, 256>}, {transform_indices = @transform_1, window_bounds = array<i64: 1, 16, 256>}, {pipeline_mode = #tpu.pipeline_mode<synchronous>, transform_indices = @transform_2, window_bounds = array<i64: 256, 384>}, {pipeline_mode = #tpu.pipeline_mode<synchronous>, transform_indices = @transform_3, window_bounds = array<i64: 286, 256>}, {pipeline_mode = #tpu.pipeline_mode<synchronous>, transform_indices = @transform_4, window_bounds = array<i64: 16, 16>}, {pipeline_mode = #tpu.pipeline_mode<synchronous>, transform_indices = @transform_5, window_bounds = array<i64: 16, 1>}, {pipeline_mode = #tpu.pipeline_mode<synchronous>, transform_indices = @transform_6, window_bounds = array<i64: 16, 9>}, {pipeline_mode = #tpu.pipeline_mode<synchronous>, transform_indices = @transform_7, window_bounds = array<i64: 16, 1>}, {pipeline_mode = #tpu.pipeline_mode<synchronous>, transform_indices = @transform_8, window_bounds = array<i64: 16, 16>}, {pipeline_mode = #tpu.pipeline_mode<synchronous>, transform_indices = @transform_9, window_bounds = array<i64: 16, 1>}, {transform_indices = @transform_10, window_bounds = array<i64: 1, 16, 512>}]} {
    %c0 = arith.constant 0 : index
    %c0_0 = arith.constant 0 : index
    %0 = vector.load %arg3[%c0, %c0_0] : memref<256x384xbf16, #tpu.memory_space<vmem>>, vector<256x384xbf16>
    %c0_1 = arith.constant 0 : index
    %c0_2 = arith.constant 0 : index
    %1 = vector.load %arg4[%c0_1, %c0_2] : memref<286x256xbf16, #tpu.memory_space<vmem>>, vector<286x256xbf16>
    %c0_3 = arith.constant 0 : index
    %c0_4 = arith.constant 0 : index
    %2 = vector.load %arg5[%c0_3, %c0_4] : memref<16x16xbf16, #tpu.memory_space<vmem>>, vector<16x16xbf16>
    %c0_5 = arith.constant 0 : index
    %c0_6 = arith.constant 0 : index
    %3 = vector.load %arg6[%c0_5, %c0_6] : memref<16x1xf32, #tpu.memory_space<vmem>>, vector<16x1xf32>
    %c0_7 = arith.constant 0 : index
    %c0_8 = arith.constant 0 : index
    %4 = vector.load %arg7[%c0_7, %c0_8] : memref<16x9xf32, #tpu.memory_space<vmem>>, vector<16x9xf32>
    %c0_9 = arith.constant 0 : index
    %c0_10 = arith.constant 0 : index
    %5 = vector.load %arg8[%c0_9, %c0_10] : memref<16x1xf32, #tpu.memory_space<vmem>>, vector<16x1xf32>
    %c0_11 = arith.constant 0 : index
    %c0_12 = arith.constant 0 : index
    %6 = vector.load %arg9[%c0_11, %c0_12] : memref<16x16xbf16, #tpu.memory_space<vmem>>, vector<16x16xbf16>
    %c0_13 = arith.constant 0 : index
    %c0_14 = arith.constant 0 : index
    %7 = vector.load %arg10[%c0_13, %c0_14] : memref<16x1xf32, #tpu.memory_space<vmem>>, vector<16x1xf32>
    %c0_15 = arith.constant 0 : index
    %c0_16 = arith.constant 0 : index
    %c0_17 = arith.constant 0 : index
    %8 = vector.load %arg2[%c0_15, %c0_16, %c0_17] : memref<1x16x256xbf16, #tpu.memory_space<vmem>>, vector<1x16x256xbf16>
    %9 = vector.shape_cast %8 : vector<1x16x256xbf16> to vector<16x256xbf16>
    %cst = arith.constant dense<0.000000e+00> : vector<16x256xf32>
    %10 = tpu.matmul %2, %9, %cst {dimension_numbers = #tpu.dot_dimension_numbers<[1], [0], [0], [1], [0, 0, 1, 1], [], []>} : vector<16x16xbf16>, vector<16x256xbf16>, vector<16x256xf32> -> vector<16x256xf32>
    %11 = vector.broadcast %3 : vector<16x1xf32> to vector<16x256xf32>
    %12 = arith.addf %10, %11 : vector<16x256xf32>
    %cst_18 = arith.constant 0.000000e+00 : f32
    %13 = vector.broadcast %cst_18 : f32 to vector<16x256xf32>
    %14 = arith.maximumf %12, %13 : vector<16x256xf32>
    %15 = arith.truncf %14 : vector<16x256xf32> to vector<16x256xbf16>
    %cst_19 = arith.constant dense<0.000000e+00> : vector<16x384xf32>
    %16 = tpu.matmul %15, %0, %cst_19 {dimension_numbers = #tpu.dot_dimension_numbers<[1], [0], [0], [1], [0, 0, 1, 1], [], []>} : vector<16x256xbf16>, vector<256x384xbf16>, vector<16x384xf32> -> vector<16x384xf32>
    %17 = vector.extract_strided_slice %16 {offsets = [0, 0], sizes = [16, 286], strides = [1, 1]} : vector<16x384xf32> to vector<16x286xf32>
    %18 = vector.extract_strided_slice %4 {offsets = [0, 0], sizes = [16, 1], strides = [1, 1]} : vector<16x9xf32> to vector<16x1xf32>
    %19 = vector.broadcast %18 : vector<16x1xf32> to vector<16x286xf32>
    %20 = arith.mulf %17, %19 : vector<16x286xf32>
    %21 = vector.extract_strided_slice %16 {offsets = [0, 1], sizes = [16, 286], strides = [1, 1]} : vector<16x384xf32> to vector<16x286xf32>
    %22 = vector.extract_strided_slice %4 {offsets = [0, 1], sizes = [16, 1], strides = [1, 1]} : vector<16x9xf32> to vector<16x1xf32>
    %23 = vector.broadcast %22 : vector<16x1xf32> to vector<16x286xf32>
    %24 = arith.mulf %21, %23 : vector<16x286xf32>
    %25 = arith.addf %20, %24 : vector<16x286xf32>
    %26 = vector.extract_strided_slice %16 {offsets = [0, 2], sizes = [16, 286], strides = [1, 1]} : vector<16x384xf32> to vector<16x286xf32>
    %27 = vector.extract_strided_slice %4 {offsets = [0, 2], sizes = [16, 1], strides = [1, 1]} : vector<16x9xf32> to vector<16x1xf32>
    %28 = vector.broadcast %27 : vector<16x1xf32> to vector<16x286xf32>
    %29 = arith.mulf %26, %28 : vector<16x286xf32>
    %30 = arith.addf %25, %29 : vector<16x286xf32>
    %31 = vector.extract_strided_slice %16 {offsets = [0, 18], sizes = [16, 286], strides = [1, 1]} : vector<16x384xf32> to vector<16x286xf32>
    %32 = vector.extract_strided_slice %4 {offsets = [0, 3], sizes = [16, 1], strides = [1, 1]} : vector<16x9xf32> to vector<16x1xf32>
    %33 = vector.broadcast %32 : vector<16x1xf32> to vector<16x286xf32>
    %34 = arith.mulf %31, %33 : vector<16x286xf32>
    %35 = arith.addf %30, %34 : vector<16x286xf32>
    %36 = vector.extract_strided_slice %16 {offsets = [0, 19], sizes = [16, 286], strides = [1, 1]} : vector<16x384xf32> to vector<16x286xf32>
    %37 = vector.extract_strided_slice %4 {offsets = [0, 4], sizes = [16, 1], strides = [1, 1]} : vector<16x9xf32> to vector<16x1xf32>
    %38 = vector.broadcast %37 : vector<16x1xf32> to vector<16x286xf32>
    %39 = arith.mulf %36, %38 : vector<16x286xf32>
    %40 = arith.addf %35, %39 : vector<16x286xf32>
    %41 = vector.extract_strided_slice %16 {offsets = [0, 20], sizes = [16, 286], strides = [1, 1]} : vector<16x384xf32> to vector<16x286xf32>
    %42 = vector.extract_strided_slice %4 {offsets = [0, 5], sizes = [16, 1], strides = [1, 1]} : vector<16x9xf32> to vector<16x1xf32>
    %43 = vector.broadcast %42 : vector<16x1xf32> to vector<16x286xf32>
    %44 = arith.mulf %41, %43 : vector<16x286xf32>
    %45 = arith.addf %40, %44 : vector<16x286xf32>
    %46 = vector.extract_strided_slice %16 {offsets = [0, 36], sizes = [16, 286], strides = [1, 1]} : vector<16x384xf32> to vector<16x286xf32>
    %47 = vector.extract_strided_slice %4 {offsets = [0, 6], sizes = [16, 1], strides = [1, 1]} : vector<16x9xf32> to vector<16x1xf32>
    %48 = vector.broadcast %47 : vector<16x1xf32> to vector<16x286xf32>
    %49 = arith.mulf %46, %48 : vector<16x286xf32>
    %50 = arith.addf %45, %49 : vector<16x286xf32>
    %51 = vector.extract_strided_slice %16 {offsets = [0, 37], sizes = [16, 286], strides = [1, 1]} : vector<16x384xf32> to vector<16x286xf32>
    %52 = vector.extract_strided_slice %4 {offsets = [0, 7], sizes = [16, 1], strides = [1, 1]} : vector<16x9xf32> to vector<16x1xf32>
    %53 = vector.broadcast %52 : vector<16x1xf32> to vector<16x286xf32>
    %54 = arith.mulf %51, %53 : vector<16x286xf32>
    %55 = arith.addf %50, %54 : vector<16x286xf32>
    %56 = vector.extract_strided_slice %16 {offsets = [0, 38], sizes = [16, 286], strides = [1, 1]} : vector<16x384xf32> to vector<16x286xf32>
    %57 = vector.extract_strided_slice %4 {offsets = [0, 8], sizes = [16, 1], strides = [1, 1]} : vector<16x9xf32> to vector<16x1xf32>
    %58 = vector.broadcast %57 : vector<16x1xf32> to vector<16x286xf32>
    %59 = arith.mulf %56, %58 : vector<16x286xf32>
    %60 = arith.addf %55, %59 : vector<16x286xf32>
    %61 = arith.truncf %60 : vector<16x286xf32> to vector<16x286xbf16>
    %cst_20 = arith.constant dense<0.000000e+00> : vector<16x256xf32>
    %62 = tpu.matmul %61, %1, %cst_20 {dimension_numbers = #tpu.dot_dimension_numbers<[1], [0], [0], [1], [0, 0, 1, 1], [], []>} : vector<16x286xbf16>, vector<286x256xbf16>, vector<16x256xf32> -> vector<16x256xf32>
    %63 = vector.broadcast %5 : vector<16x1xf32> to vector<16x256xf32>
    %64 = arith.addf %62, %63 : vector<16x256xf32>
    %65 = arith.truncf %64 : vector<16x256xf32> to vector<16x256xbf16>
    %cst_21 = arith.constant dense<0.000000e+00> : vector<16x256xf32>
    %66 = tpu.matmul %6, %65, %cst_21 {dimension_numbers = #tpu.dot_dimension_numbers<[1], [0], [0], [1], [0, 0, 1, 1], [], []>} : vector<16x16xbf16>, vector<16x256xbf16>, vector<16x256xf32> -> vector<16x256xf32>
    %67 = vector.broadcast %7 : vector<16x1xf32> to vector<16x256xf32>
    %68 = arith.addf %66, %67 : vector<16x256xf32>
    %cst_22 = arith.constant 0.000000e+00 : f32
    %69 = vector.broadcast %cst_22 : f32 to vector<16x256xf32>
    %70 = arith.maximumf %68, %69 : vector<16x256xf32>
    %c0_23 = arith.constant 0 : index
    %c0_24 = arith.constant 0 : index
    %c0_25 = arith.constant 0 : index
    %71 = vector.load %arg1[%c0_23, %c0_24, %c0_25] : memref<1x16x256xf32, #tpu.memory_space<vmem>>, vector<1x16x256xf32>
    %72 = vector.shape_cast %71 : vector<1x16x256xf32> to vector<16x256xf32>
    %73 = tpu.concatenate %72, %70 in 1 : vector<16x256xf32>, vector<16x256xf32> -> vector<16x512xf32>
    %c0_26 = arith.constant 0 : index
    %c0_27 = arith.constant 0 : index
    %c0_28 = arith.constant 0 : index
    %74 = vector.load %arg11[%c0_26, %c0_27, %c0_28] : memref<1x16x512xf32, #tpu.memory_space<vmem>>, vector<1x16x512xf32>
    %75 = vector.shape_cast %74 : vector<1x16x512xf32> to vector<16x512xf32>
    %76 = vector.shape_cast %73 : vector<16x512xf32> to vector<1x16x512xf32>
    tpu.vector_store %arg11[%c0_26, %c0_27, %c0_28], %76 {strides = array<i32>} : memref<1x16x512xf32, #tpu.memory_space<vmem>>, vector<1x16x512xf32>,
    return
  }
  func.func @transform_0(%arg0: i32) -> (i32, i32, i32) {
    %c0_i32 = arith.constant 0 : i32
    %c0_i32_0 = arith.constant 0 : i32
    %c0_i32_1 = arith.constant 0 : i32
    return %arg0, %c0_i32, %c0_i32_0 : i32, i32, i32
  }
  func.func @transform_1(%arg0: i32) -> (i32, i32, i32) {
    %c0_i32 = arith.constant 0 : i32
    %c0_i32_0 = arith.constant 0 : i32
    %c0_i32_1 = arith.constant 0 : i32
    return %arg0, %c0_i32, %c0_i32_0 : i32, i32, i32
  }
  func.func @transform_2(%arg0: i32) -> (i32, i32) {
    %c0_i32 = arith.constant 0 : i32
    %c0_i32_0 = arith.constant 0 : i32
    %c0_i32_1 = arith.constant 0 : i32
    return %c0_i32, %c0_i32_0 : i32, i32
  }
  func.func @transform_3(%arg0: i32) -> (i32, i32) {
    %c0_i32 = arith.constant 0 : i32
    %c0_i32_0 = arith.constant 0 : i32
    %c0_i32_1 = arith.constant 0 : i32
    return %c0_i32, %c0_i32_0 : i32, i32
  }
  func.func @transform_4(%arg0: i32) -> (i32, i32) {
    %c0_i32 = arith.constant 0 : i32
    %c0_i32_0 = arith.constant 0 : i32
    %c0_i32_1 = arith.constant 0 : i32
    return %c0_i32, %c0_i32_0 : i32, i32
  }
  func.func @transform_5(%arg0: i32) -> (i32, i32) {
    %c0_i32 = arith.constant 0 : i32
    %c0_i32_0 = arith.constant 0 : i32
    %c0_i32_1 = arith.constant 0 : i32
    return %c0_i32, %c0_i32_0 : i32, i32
  }
  func.func @transform_6(%arg0: i32) -> (i32, i32) {
    %c0_i32 = arith.constant 0 : i32
    %c0_i32_0 = arith.constant 0 : i32
    %c0_i32_1 = arith.constant 0 : i32
    return %c0_i32, %c0_i32_0 : i32, i32
  }
  func.func @transform_7(%arg0: i32) -> (i32, i32) {
    %c0_i32 = arith.constant 0 : i32
    %c0_i32_0 = arith.constant 0 : i32
    %c0_i32_1 = arith.constant 0 : i32
    return %c0_i32, %c0_i32_0 : i32, i32
  }
  func.func @transform_8(%arg0: i32) -> (i32, i32) {
    %c0_i32 = arith.constant 0 : i32
    %c0_i32_0 = arith.constant 0 : i32
    %c0_i32_1 = arith.constant 0 : i32
    return %c0_i32, %c0_i32_0 : i32, i32
  }
  func.func @transform_9(%arg0: i32) -> (i32, i32) {
    %c0_i32 = arith.constant 0 : i32
    %c0_i32_0 = arith.constant 0 : i32
    %c0_i32_1 = arith.constant 0 : i32
    return %c0_i32, %c0_i32_0 : i32, i32
  }
  func.func @transform_10(%arg0: i32) -> (i32, i32, i32) {
    %c0_i32 = arith.constant 0 : i32
    %c0_i32_0 = arith.constant 0 : i32
    %c0_i32_1 = arith.constant 0 : i32
    return %arg0, %c0_i32, %c0_i32_0 : i32, i32, i32
  }
}

</mosaic_0001>

<llo_original>
// kernel: inverted_residual_forward.1
$region0: #{inverted_residual_forward.1}
  #allocation0 [shape = 'u32[]', space=smem, size = 0x4, offset = 0x4, fixed_abs, tag = 'smem constant byte address 0x4 - core index']
  #allocation1 [shape = 'u32[144,128]{1,0:T(1,128)}', space=vmem, size = 0x12000, scoped, tag = 'internal scratch']
  %s0 = inlined_call_operand.vmem [shape: f32[2,16,256], index: 0, kind: input, shape index: {}]
  %s1 = inlined_call_operand.vmem [shape: bf16[2,16,256], index: 1, kind: input, shape index: {}]
  %s2 = inlined_call_operand.vmem [shape: bf16[256,384], index: 2, kind: input, shape index: {}]
  %s3 = inlined_call_operand.vmem [shape: bf16[286,256], index: 3, kind: input, shape index: {}]
  %s4 = inlined_call_operand.vmem [shape: bf16[16,16], index: 4, kind: input, shape index: {}]
  %s5 = inlined_call_operand.vmem [shape: f32[16,1], index: 5, kind: input, shape index: {}]
  %s6 = inlined_call_operand.vmem [shape: f32[16,9], index: 6, kind: input, shape index: {}]
  %s7 = inlined_call_operand.vmem [shape: f32[16,1], index: 7, kind: input, shape index: {}]
  %s8 = inlined_call_operand.vmem [shape: bf16[16,16], index: 8, kind: input, shape index: {}]
  %s9 = inlined_call_operand.vmem [shape: f32[16,1], index: 9, kind: input, shape index: {}]
  %s10 = inlined_call_operand.vmem [shape: f32[2,16,512], index: 10, kind: output, shape index: {}]
  %s11 = sld [smem:[#allocation0]]
  $region73: #{inverted_residual_forward.1} parent=0
    _
  %s13 = ssub.s32 1, %s11
  %s14 = scalar_select 0, %s13, %s11
  loop: start=0, step=1, limit=4
  $region2: #{inverted_residual_forward.1} parent=0 // loop_pre_header
    _
  $region3: #{inverted_residual_forward.1} parent=0 // loop_header
    %s16 = sphi 0, %s20
    %p17 = scmp.ge.s32.totalorder %s16, 4
    %s26 = sphi 0, %s28
    %s29 = sphi 0, %s26
    %s30 = sphi 0, %s29
    %s46 = sphi 0, %s30
    %s52 = sphi 0, %s54
    %s55 = sphi 0, %s52
    %s56 = sphi 0, %s55
    %s72 = sphi 0, %s56
    %s76 = sphi 0, %s76
    %s78 = sphi 0, %s76
    %s79 = sphi 0, %s78
    %s93 = sphi 0, %s79
    %s97 = sphi 0, %s97
    %s99 = sphi 0, %s97
    %s100 = sphi 0, %s99
    %s114 = sphi 0, %s100
    %s118 = sphi 0, %s118
    %s120 = sphi 0, %s118
    %s121 = sphi 0, %s120
    %s135 = sphi 0, %s121
    %s139 = sphi 0, %s139
    %s141 = sphi 0, %s139
    %s142 = sphi 0, %s141
    %s156 = sphi 0, %s142
    %s160 = sphi 0, %s160
    %s162 = sphi 0, %s160
    %s163 = sphi 0, %s162
    %s177 = sphi 0, %s163
    %s181 = sphi 0, %s181
    %s183 = sphi 0, %s181
    %s184 = sphi 0, %s183
    %s198 = sphi 0, %s184
    %s202 = sphi 0, %s202
    %s204 = sphi 0, %s202
    %s205 = sphi 0, %s204
    %s219 = sphi 0, %s205
    %s223 = sphi 0, %s223
    %s225 = sphi 0, %s223
    %s226 = sphi 0, %s225
    %s240 = sphi 0, %s226
    %s246 = sphi 0, %s248
    %s249 = sphi 0, %s246
    %s250 = sphi 0, %s249
    %s266 = sphi 0, %s250
  $region4: #{inverted_residual_forward.1} parent=0 // loop_header_branch
    %19 = sbr.rel (%p17) target = $region8
  $region5: #{inverted_residual_forward.1} parent=0 // loop_body
    %s21 = ssub.s32 %s16, 1
    %s22 = ssub.s32 %s16, 2
    %s23 = sadd.s32 %s16, 1
    %s24 = ssub.s32 %s16, %s23
    %p25 = scmp.eq.s32.totalorder %s24, 0
    %s27 = sadd.s32 %s26, 1
    %s28 = scalar_select %p25, %s26, %s27
    %p31 = pneg %p25
    %p32 = scmp.eq.s32.totalorder %s16, 1
    %p33 = por %p31, %p32
    %p34 = scmp.ne.s32.totalorder %s26, %s29
    %p35 = scmp.eq.s32.totalorder %s16, 0
    %p36 = por %p34, %p35
    %p37 = scmp.ne.s32.totalorder %s26, %s29
    %p38 = scmp.eq.s32.totalorder %s21, 1
    %p39 = por %p37, %p38
    %p40 = scmp.ne.s32.totalorder %s29, %s30
    %p41 = scmp.eq.s32.totalorder %s21, 0
    %p42 = por %p40, %p41
    %p43 = scmp.ne.s32.totalorder %s29, %s30
    %p44 = scmp.eq.s32.totalorder %s22, 1
    %p45 = por %p43, %p44
    %p47 = scmp.ne.s32.totalorder %s30, %s46
    %p48 = scmp.eq.s32.totalorder %s22, 0
    %p49 = por %p47, %p48
    %s50 = ssub.s32 %s16, %s23
    %p51 = scmp.eq.s32.totalorder %s50, 0
    %s53 = sadd.s32 %s52, 1
    %s54 = scalar_select %p51, %s52, %s53
    %p57 = pneg %p51
    %p58 = scmp.eq.s32.totalorder %s16, 1
    %p59 = por %p57, %p58
    %p60 = scmp.ne.s32.totalorder %s52, %s55
    %p61 = scmp.eq.s32.totalorder %s16, 0
    %p62 = por %p60, %p61
    %p63 = scmp.ne.s32.totalorder %s52, %s55
    %p64 = scmp.eq.s32.totalorder %s21, 1
    %p65 = por %p63, %p64
    %p66 = scmp.ne.s32.totalorder %s55, %s56
    %p67 = scmp.eq.s32.totalorder %s21, 0
    %p68 = por %p66, %p67
    %p69 = scmp.ne.s32.totalorder %s55, %s56
    %p70 = scmp.eq.s32.totalorder %s22, 1
    %p71 = por %p69, %p70
    %p73 = scmp.ne.s32.totalorder %s56, %s72
    %p74 = scmp.eq.s32.totalorder %s22, 0
    %p75 = por %p73, %p74
    %s77 = sadd.s32 %s76, 1
    %p80 = scmp.eq.s32.totalorder %s16, 1
    %p81 = scmp.ne.s32.totalorder %s76, %s78
    %p82 = scmp.eq.s32.totalorder %s16, 0
    %p83 = por %p81, %p82
    %p84 = scmp.ne.s32.totalorder %s76, %s78
    %p85 = scmp.eq.s32.totalorder %s21, 1
    %p86 = por %p84, %p85
    %p87 = scmp.ne.s32.totalorder %s78, %s79
    %p88 = scmp.eq.s32.totalorder %s21, 0
    %p89 = por %p87, %p88
    %p90 = scmp.ne.s32.totalorder %s78, %s79
    %p91 = scmp.eq.s32.totalorder %s22, 1
    %p92 = por %p90, %p91
    %p94 = scmp.ne.s32.totalorder %s79, %s93
    %p95 = scmp.eq.s32.totalorder %s22, 0
    %p96 = por %p94, %p95
    %s98 = sadd.s32 %s97, 1
    %p101 = scmp.eq.s32.totalorder %s16, 1
    %p102 = scmp.ne.s32.totalorder %s97, %s99
    %p103 = scmp.eq.s32.totalorder %s16, 0
    %p104 = por %p102, %p103
    %p105 = scmp.ne.s32.totalorder %s97, %s99
    %p106 = scmp.eq.s32.totalorder %s21, 1
    %p107 = por %p105, %p106
    %p108 = scmp.ne.s32.totalorder %s99, %s100
    %p109 = scmp.eq.s32.totalorder %s21, 0
    %p110 = por %p108, %p109
    %p111 = scmp.ne.s32.totalorder %s99, %s100
    %p112 = scmp.eq.s32.totalorder %s22, 1
    %p113 = por %p111, %p112
    %p115 = scmp.ne.s32.totalorder %s100, %s114
    %p116 = scmp.eq.s32.totalorder %s22, 0
    %p117 = por %p115, %p116
    %s119 = sadd.s32 %s118, 1
    %p122 = scmp.eq.s32.totalorder %s16, 1
    %p123 = scmp.ne.s32.totalorder %s118, %s120
    %p124 = scmp.eq.s32.totalorder %s16, 0
    %p125 = por %p123, %p124
    %p126 = scmp.ne.s32.totalorder %s118, %s120
    %p127 = scmp.eq.s32.totalorder %s21, 1
    %p128 = por %p126, %p127
    %p129 = scmp.ne.s32.totalorder %s120, %s121
    %p130 = scmp.eq.s32.totalorder %s21, 0
    %p131 = por %p129, %p130
    %p132 = scmp.ne.s32.totalorder %s120, %s121
    %p133 = scmp.eq.s32.totalorder %s22, 1
    %p134 = por %p132, %p133
    %p136 = scmp.ne.s32.totalorder %s121, %s135
    %p137 = scmp.eq.s32.totalorder %s22, 0
    %p138 = por %p136, %p137
    %s140 = sadd.s32 %s139, 1
    %p143 = scmp.eq.s32.totalorder %s16, 1
    %p144 = scmp.ne.s32.totalorder %s139, %s141
    %p145 = scmp.eq.s32.totalorder %s16, 0
    %p146 = por %p144, %p145
    %p147 = scmp.ne.s32.totalorder %s139, %s141
    %p148 = scmp.eq.s32.totalorder %s21, 1
    %p149 = por %p147, %p148
    %p150 = scmp.ne.s32.totalorder %s141, %s142
    %p151 = scmp.eq.s32.totalorder %s21, 0
    %p152 = por %p150, %p151
    %p153 = scmp.ne.s32.totalorder %s141, %s142
    %p154 = scmp.eq.s32.totalorder %s22, 1
    %p155 = por %p153, %p154
    %p157 = scmp.ne.s32.totalorder %s142, %s156
    %p158 = scmp.eq.s32.totalorder %s22, 0
    %p159 = por %p157, %p158
    %s161 = sadd.s32 %s160, 1
    %p164 = scmp.eq.s32.totalorder %s16, 1
    %p165 = scmp.ne.s32.totalorder %s160, %s162
    %p166 = scmp.eq.s32.totalorder %s16, 0
    %p167 = por %p165, %p166
    %p168 = scmp.ne.s32.totalorder %s160, %s162
    %p169 = scmp.eq.s32.totalorder %s21, 1
    %p170 = por %p168, %p169
    %p171 = scmp.ne.s32.totalorder %s162, %s163
    %p172 = scmp.eq.s32.totalorder %s21, 0
    %p173 = por %p171, %p172
    %p174 = scmp.ne.s32.totalorder %s162, %s163
    %p175 = scmp.eq.s32.totalorder %s22, 1
    %p176 = por %p174, %p175
    %p178 = scmp.ne.s32.totalorder %s163, %s177
    %p179 = scmp.eq.s32.totalorder %s22, 0
    %p180 = por %p178, %p179
    %s182 = sadd.s32 %s181, 1
    %p185 = scmp.eq.s32.totalorder %s16, 1
    %p186 = scmp.ne.s32.totalorder %s181, %s183
    %p187 = scmp.eq.s32.totalorder %s16, 0
    %p188 = por %p186, %p187
    %p189 = scmp.ne.s32.totalorder %s181, %s183
    %p190 = scmp.eq.s32.totalorder %s21, 1
    %p191 = por %p189, %p190
    %p192 = scmp.ne.s32.totalorder %s183, %s184
    %p193 = scmp.eq.s32.totalorder %s21, 0
    %p194 = por %p192, %p193
    %p195 = scmp.ne.s32.totalorder %s183, %s184
    %p196 = scmp.eq.s32.totalorder %s22, 1
    %p197 = por %p195, %p196
    %p199 = scmp.ne.s32.totalorder %s184, %s198
    %p200 = scmp.eq.s32.totalorder %s22, 0
    %p201 = por %p199, %p200
    %s203 = sadd.s32 %s202, 1
    %p206 = scmp.eq.s32.totalorder %s16, 1
    %p207 = scmp.ne.s32.totalorder %s202, %s204
    %p208 = scmp.eq.s32.totalorder %s16, 0
    %p209 = por %p207, %p208
    %p210 = scmp.ne.s32.totalorder %s202, %s204
    %p211 = scmp.eq.s32.totalorder %s21, 1
    %p212 = por %p210, %p211
    %p213 = scmp.ne.s32.totalorder %s204, %s205
    %p214 = scmp.eq.s32.totalorder %s21, 0
    %p215 = por %p213, %p214
    %p216 = scmp.ne.s32.totalorder %s204, %s205
    %p217 = scmp.eq.s32.totalorder %s22, 1
    %p218 = por %p216, %p217
    %p220 = scmp.ne.s32.totalorder %s205, %s219
    %p221 = scmp.eq.s32.totalorder %s22, 0
    %p222 = por %p220, %p221
    %s224 = sadd.s32 %s223, 1
    %p227 = scmp.eq.s32.totalorder %s16, 1
    %p228 = scmp.ne.s32.totalorder %s223, %s225
    %p229 = scmp.eq.s32.totalorder %s16, 0
    %p230 = por %p228, %p229
    %p231 = scmp.ne.s32.totalorder %s223, %s225
    %p232 = scmp.eq.s32.totalorder %s21, 1
    %p233 = por %p231, %p232
    %p234 = scmp.ne.s32.totalorder %s225, %s226
    %p235 = scmp.eq.s32.totalorder %s21, 0
    %p236 = por %p234, %p235
    %p237 = scmp.ne.s32.totalorder %s225, %s226
    %p238 = scmp.eq.s32.totalorder %s22, 1
    %p239 = por %p237, %p238
    %p241 = scmp.ne.s32.totalorder %s226, %s240
    %p242 = scmp.eq.s32.totalorder %s22, 0
    %p243 = por %p241, %p242
    %s244 = ssub.s32 %s16, %s23
    %p245 = scmp.eq.s32.totalorder %s244, 0
    %s247 = sadd.s32 %s246, 1
    %s248 = scalar_select %p245, %s246, %s247
    %p251 = pneg %p245
    %p252 = scmp.eq.s32.totalorder %s16, 1
    %p253 = por %p251, %p252
    %p254 = scmp.ne.s32.totalorder %s246, %s249
    %p255 = scmp.eq.s32.totalorder %s16, 0
    %p256 = por %p254, %p255
    %p257 = scmp.ne.s32.totalorder %s246, %s249
    %p258 = scmp.eq.s32.totalorder %s21, 1
    %p259 = por %p257, %p258
    %p260 = scmp.ne.s32.totalorder %s249, %s250
    %p261 = scmp.eq.s32.totalorder %s21, 0
    %p262 = por %p260, %p261
    %p263 = scmp.ne.s32.totalorder %s249, %s250
    %p264 = scmp.eq.s32.totalorder %s22, 1
    %p265 = por %p263, %p264
    %p267 = scmp.ne.s32.totalorder %s250, %s266
    %p268 = scmp.eq.s32.totalorder %s22, 0
    %p269 = por %p267, %p268
    %p270 = scmp.le.s32.totalorder 1, %s16
    %p271 = scmp.lt.s32.totalorder %s16, 3
    %p272 = pnand %p270, %p271
    %p273 = pneg %p272
    // Predicated region
    $region9: #{inverted_residual_forward.1} parent=5 // pred_check
      _
    $region10: #{inverted_residual_forward.1} parent=5 // pred_check_branch
      %275 = sbr.rel (%p272) target = $region12
    $region11: #{inverted_residual_forward.1} parent=5 // pred_region
      %s276 = ssub.s32 %s16, 1
      // Predicated region
      $region13: #{inverted_residual_forward.1} parent=11 // pred_check
        %p277 = pneg %p89
      $region14: #{inverted_residual_forward.1} parent=11 // pred_check_branch
        %279 = sbr.rel (%p277) target = $region16
      $region15: #{inverted_residual_forward.1} parent=11 // pred_region
        _
      $region16: #{inverted_residual_forward.1} parent=11 // pred_fallthru
        _
      // Predicated region
      $region17: #{inverted_residual_forward.1} parent=11 // pred_check
        %p280 = pneg %p110
      $region18: #{inverted_residual_forward.1} parent=11 // pred_check_branch
        %282 = sbr.rel (%p280) target = $region20
      $region19: #{inverted_residual_forward.1} parent=11 // pred_region
        _
      $region20: #{inverted_residual_forward.1} parent=11 // pred_fallthru
        _
      // Predicated region
      $region21: #{inverted_residual_forward.1} parent=11 // pred_check
        %p283 = pneg %p131
      $region22: #{inverted_residual_forward.1} parent=11 // pred_check_branch
        %285 = sbr.rel (%p283) target = $region24
      $region23: #{inverted_residual_forward.1} parent=11 // pred_region
        _
      $region24: #{inverted_residual_forward.1} parent=11 // pred_fallthru
        _
      // Predicated region
      $region25: #{inverted_residual_forward.1} parent=11 // pred_check
        %p286 = pneg %p152
      $region26: #{inverted_residual_forward.1} parent=11 // pred_check_branch
        %288 = sbr.rel (%p286) target = $region28
      $region27: #{inverted_residual_forward.1} parent=11 // pred_region
        _
      $region28: #{inverted_residual_forward.1} parent=11 // pred_fallthru
        _
      // Predicated region
      $region29: #{inverted_residual_forward.1} parent=11 // pred_check
        %p289 = pneg %p173
      $region30: #{inverted_residual_forward.1} parent=11 // pred_check_branch
        %291 = sbr.rel (%p289) target = $region32
      $region31: #{inverted_residual_forward.1} parent=11 // pred_region
        _
      $region32: #{inverted_residual_forward.1} parent=11 // pred_fallthru
        _
      // Predicated region
      $region33: #{inverted_residual_forward.1} parent=11 // pred_check
        %p292 = pneg %p194
      $region34: #{inverted_residual_forward.1} parent=11 // pred_check_branch
        %294 = sbr.rel (%p292) target = $region36
      $region35: #{inverted_residual_forward.1} parent=11 // pred_region
        _
      $region36: #{inverted_residual_forward.1} parent=11 // pred_fallthru
        _
      // Predicated region
      $region37: #{inverted_residual_forward.1} parent=11 // pred_check
        %p295 = pneg %p215
      $region38: #{inverted_residual_forward.1} parent=11 // pred_check_branch
        %297 = sbr.rel (%p295) target = $region40
      $region39: #{inverted_residual_forward.1} parent=11 // pred_region
        _
      $region40: #{inverted_residual_forward.1} parent=11 // pred_fallthru
        _
      // Predicated region
      $region41: #{inverted_residual_forward.1} parent=11 // pred_check
        %p298 = pneg %p236
      $region42: #{inverted_residual_forward.1} parent=11 // pred_check_branch
        %300 = sbr.rel (%p298) target = $region44
      $region43: #{inverted_residual_forward.1} parent=11 // pred_region
        _
      $region44: #{inverted_residual_forward.1} parent=11 // pred_fallthru
        _
    $region12: #{inverted_residual_forward.1} parent=5 // pred_fallthru
      _
    %p301 = scmp.lt.s32.totalorder %s16, 2
    // Predicated region
    $region45: #{inverted_residual_forward.1} parent=5 // pred_check
      %p302 = pneg %p301
    $region46: #{inverted_residual_forward.1} parent=5 // pred_check_branch
      %304 = sbr.rel (%p302) target = $region48
    $region47: #{inverted_residual_forward.1} parent=5 // pred_region
      // Predicated region
      $region49: #{inverted_residual_forward.1} parent=47 // pred_check
        %p305 = pneg %p36
      $region50: #{inverted_residual_forward.1} parent=47 // pred_check_branch
        %307 = sbr.rel (%p305) target = $region52
      $region51: #{inverted_residual_forward.1} parent=47 // pred_region
        %p308 = scmp.lt.s32.totalorder %s16, 1
        %s309 = scalar_select %p308, %s16, 1
        %s310 = smul.addr %s309, 4
        %s311 = smul.addr %s310, 8
        %s312 = scalar_lea.vmem %s0, %s311
      $region52: #{inverted_residual_forward.1} parent=47 // pred_fallthru
        _
      // Predicated region
      $region53: #{inverted_residual_forward.1} parent=47 // pred_check
        %p313 = pneg %p62
      $region54: #{inverted_residual_forward.1} parent=47 // pred_check_branch
        %315 = sbr.rel (%p313) target = $region56
      $region55: #{inverted_residual_forward.1} parent=47 // pred_region
        %p316 = scmp.lt.s32.totalorder %s16, 1
        %s317 = scalar_select %p316, %s16, 1
        %s318 = smul.addr %s317, 4
        %s319 = smul.addr %s318, 4
        %s320 = scalar_lea.vmem %s1, %s319
      $region56: #{inverted_residual_forward.1} parent=47 // pred_fallthru
        _
    $region48: #{inverted_residual_forward.1} parent=5 // pred_fallthru
      _
    %p321 = scmp.le.s32.totalorder 1, %s16
    %p322 = scmp.lt.s32.totalorder %s16, 3
    %p323 = pnand %p321, %p322
    %p324 = pneg %p323
    // Predicated region
    $region57: #{inverted_residual_forward.1} parent=5 // pred_check
      _
    $region58: #{inverted_residual_forward.1} parent=5 // pred_check_branch
      %326 = sbr.rel (%p323) target = $region60
    $region59: #{inverted_residual_forward.1} parent=5 // pred_region
      %s327 = ssub.s32 %s16, 1
      %p328 = scmp.lt.s32.totalorder %s21, 1
      %s329 = scalar_select %p328, %s21, 1
      %s330 = smul.addr %s329, 4
      %s331 = smul.addr %s330, 8
      %s332 = scalar_lea.vmem %s0, %s331
      %p333 = pneg %p42
      %p334 = pneg %p39
      %p335 = scmp.lt.s32.totalorder %s21, 1
      %s336 = scalar_select %p335, %s21, 1
      %s337 = smul.addr %s336, 4
      %s338 = smul.addr %s337, 4
      %s339 = scalar_lea.vmem %s1, %s338
      %p340 = pneg %p68
      %p341 = pneg %p65
      %p342 = pneg %p89
      %p343 = pneg %p86
      %p344 = pneg %p110
      %p345 = pneg %p107
      %p346 = pneg %p131
      %p347 = pneg %p128
      %p348 = pneg %p152
      %p349 = pneg %p149
      %p350 = pneg %p173
      %p351 = pneg %p170
      %p352 = pneg %p194
      %p353 = pneg %p191
      %p354 = pneg %p215
      %p355 = pneg %p212
      %p356 = pneg %p236
      %p357 = pneg %p233
      %p358 = pneg %p262
      %p359 = pneg %p259
      %p360 = scmp.lt.s32.totalorder %s21, 1
      %s361 = scalar_select %p360, %s21, 1
      %s362 = smul.addr %s361, 8
      %s363 = smul.addr %s362, 8
      %s364 = scalar_lea.vmem %s10, %s363
      %p365 = scmp.lt.s32.totalorder %s21, 1
      %s366 = scalar_select %p365, %s21, 1
      %s367 = smul.addr %s366, 4
      %s368 = smul.addr %s367, 8
      %s369 = scalar_lea.vmem %s0, %s368
      %p370 = scmp.lt.s32.totalorder %s21, 1
      %s371 = scalar_select %p370, %s21, 1
      %s372 = smul.addr %s371, 4
      %s373 = smul.addr %s372, 4
      %s374 = scalar_lea.vmem %s1, %s373
      %p375 = scmp.lt.s32.totalorder %s21, 1
      %s376 = scalar_select %p375, %s21, 1
      %s377 = smul.addr %s376, 8
      %s378 = smul.addr %s377, 8
      %s379 = scalar_lea.vmem %s10, %s378
      %v381 = vld [vmem:[%s2] sm:$0xff]
      %v382 = vld [vmem:[%s2 + $0x8] sm:$0xf]
      %v383 = vld [vmem:[%s2 + $0xc] sm:$0xff]
      %v384 = vld [vmem:[%s2 + $0x14] sm:$0xf]
      %v385 = vld [vmem:[%s2 + $0x18] sm:$0xff]
      %v386 = vld [vmem:[%s2 + $0x20] sm:$0xf]
      %v387 = vld [vmem:[%s2 + $0x24] sm:$0xff]
      %v388 = vld [vmem:[%s2 + $0x2c] sm:$0xf]
      %v389 = vld [vmem:[%s2 + $0x30] sm:$0xff]
      %v390 = vld [vmem:[%s2 + $0x38] sm:$0xf]
      %v391 = vld [vmem:[%s2 + $0x3c] sm:$0xff]
      %v392 = vld [vmem:[%s2 + $0x44] sm:$0xf]
      %v393 = vld [vmem:[%s2 + $0x48] sm:$0xff]
      %v394 = vld [vmem:[%s2 + $0x50] sm:$0xf]
      %v395 = vld [vmem:[%s2 + $0x54] sm:$0xff]
      %v396 = vld [vmem:[%s2 + $0x5c] sm:$0xf]
      %v397 = vld [vmem:[%s2 + $0x60] sm:$0xff]
      %v398 = vld [vmem:[%s2 + $0x68] sm:$0xf]
      %v399 = vld [vmem:[%s2 + $0x6c] sm:$0xff]
      %v400 = vld [vmem:[%s2 + $0x74] sm:$0xf]
      %v401 = vld [vmem:[%s2 + $0x78] sm:$0xff]
      %v402 = vld [vmem:[%s2 + $0x80] sm:$0xf]
      %v403 = vld [vmem:[%s2 + $0x84] sm:$0xff]
      %v404 = vld [vmem:[%s2 + $0x8c] sm:$0xf]
      %v405 = vld [vmem:[%s2 + $0x90] sm:$0xff]
      %v406 = vld [vmem:[%s2 + $0x98] sm:$0xf]
      %v407 = vld [vmem:[%s2 + $0x9c] sm:$0xff]
      %v408 = vld [vmem:[%s2 + $0xa4] sm:$0xf]
      %v409 = vld [vmem:[%s2 + $0xa8] sm:$0xff]
      %v410 = vld [vmem:[%s2 + $0xb0] sm:$0xf]
      %v411 = vld [vmem:[%s2 + $0xb4] sm:$0xff]
      %v412 = vld [vmem:[%s2 + $0xbc] sm:$0xf]
      %v413 = vld [vmem:[%s2 + $0xc0] sm:$0xff]
      %v414 = vld [vmem:[%s2 + $0xc8] sm:$0xf]
      %v415 = vld [vmem:[%s2 + $0xcc] sm:$0xff]
      %v416 = vld [vmem:[%s2 + $0xd4] sm:$0xf]
      %v417 = vld [vmem:[%s2 + $0xd8] sm:$0xff]
      %v418 = vld [vmem:[%s2 + $0xe0] sm:$0xf]
      %v419 = vld [vmem:[%s2 + $0xe4] sm:$0xff]
      %v420 = vld [vmem:[%s2 + $0xec] sm:$0xf]
      %v421 = vld [vmem:[%s2 + $0xf0] sm:$0xff]
      %v422 = vld [vmem:[%s2 + $0xf8] sm:$0xf]
      %v423 = vld [vmem:[%s2 + $0xfc] sm:$0xff]
      %v424 = vld [vmem:[%s2 + $0x104] sm:$0xf]
      %v425 = vld [vmem:[%s2 + $0x108] sm:$0xff]
      %v426 = vld [vmem:[%s2 + $0x110] sm:$0xf]
      %v427 = vld [vmem:[%s2 + $0x114] sm:$0xff]
      %v428 = vld [vmem:[%s2 + $0x11c] sm:$0xf]
      %v429 = vld [vmem:[%s2 + $0x120] sm:$0xff]
      %v430 = vld [vmem:[%s2 + $0x128] sm:$0xf]
      %v431 = vld [vmem:[%s2 + $0x12c] sm:$0xff]
      %v432 = vld [vmem:[%s2 + $0x134] sm:$0xf]
      %v433 = vld [vmem:[%s2 + $0x138] sm:$0xff]
      %v434 = vld [vmem:[%s2 + $0x140] sm:$0xf]
      %v435 = vld [vmem:[%s2 + $0x144] sm:$0xff]
      %v436 = vld [vmem:[%s2 + $0x14c] sm:$0xf]
      %v437 = vld [vmem:[%s2 + $0x150] sm:$0xff]
      %v438 = vld [vmem:[%s2 + $0x158] sm:$0xf]
      %v439 = vld [vmem:[%s2 + $0x15c] sm:$0xff]
      %v440 = vld [vmem:[%s2 + $0x164] sm:$0xf]
      %v441 = vld [vmem:[%s2 + $0x168] sm:$0xff]
      %v442 = vld [vmem:[%s2 + $0x170] sm:$0xf]
      %v443 = vld [vmem:[%s2 + $0x174] sm:$0xff]
      %v444 = vld [vmem:[%s2 + $0x17c] sm:$0xf]
      %v445 = vld [vmem:[%s3] sm:$0xff]
      %v446 = vld [vmem:[%s3 + $0x8] sm:$0xff]
      %v447 = vld [vmem:[%s3 + $0x10] sm:$0xff]
      %v448 = vld [vmem:[%s3 + $0x18] sm:$0xff]
      %v449 = vld [vmem:[%s3 + $0x20] sm:$0xff]
      %v450 = vld [vmem:[%s3 + $0x28] sm:$0xff]
      %v451 = vld [vmem:[%s3 + $0x30] sm:$0xff]
      %v452 = vld [vmem:[%s3 + $0x38] sm:$0xff]
      %v453 = vld [vmem:[%s3 + $0x40] sm:$0xff]
      %v454 = vld [vmem:[%s3 + $0x48] sm:$0xff]
      %v455 = vld [vmem:[%s3 + $0x50] sm:$0xff]
      %v456 = vld [vmem:[%s3 + $0x58] sm:$0xff]
      %v457 = vld [vmem:[%s3 + $0x60] sm:$0xff]
      %v458 = vld [vmem:[%s3 + $0x68] sm:$0xff]
      %v459 = vld [vmem:[%s3 + $0x70] sm:$0xff]
      %v460 = vld [vmem:[%s3 + $0x78] sm:$0xff]
      %v461 = vld [vmem:[%s3 + $0x80] sm:$0xff]
      %v462 = vld [vmem:[%s3 + $0x88] sm:$0xff]
      %v463 = vld [vmem:[%s3 + $0x90] sm:$0xff]
      %v464 = vld [vmem:[%s3 + $0x98] sm:$0xff]
      %v465 = vld [vmem:[%s3 + $0xa0] sm:$0xff]
      %v466 = vld [vmem:[%s3 + $0xa8] sm:$0xff]
      %v467 = vld [vmem:[%s3 + $0xb0] sm:$0xff]
      %v468 = vld [vmem:[%s3 + $0xb8] sm:$0xff]
      %v469 = vld [vmem:[%s3 + $0xc0] sm:$0xff]
      %v470 = vld [vmem:[%s3 + $0xc8] sm:$0xff]
      %v471 = vld [vmem:[%s3 + $0xd0] sm:$0xff]
      %v472 = vld [vmem:[%s3 + $0xd8] sm:$0xff]
      %v473 = vld [vmem:[%s3 + $0xe0] sm:$0xff]
      %v474 = vld [vmem:[%s3 + $0xe8] sm:$0xff]
      %v475 = vld [vmem:[%s3 + $0xf0] sm:$0xff]
      %v476 = vld [vmem:[%s3 + $0xf8] sm:$0xff]
      %v477 = vld [vmem:[%s3 + $0x100] sm:$0xff]
      %v478 = vld [vmem:[%s3 + $0x108] sm:$0xff]
      %v479 = vld [vmem:[%s3 + $0x110] sm:$0xff]
      %v480 = vld [vmem:[%s3 + $0x118] sm:$0x77]
      %v481 = vld [vmem:[%s4] sm:$0xf]
      %v482 = vld [vmem:[%s4 + $0x4] sm:$0xf]
      %v483 = vld [vmem:[%s5] sm:$0xff]
      %v484 = vld [vmem:[%s5 + $0x8] sm:$0xff]
      %v485 = vld [vmem:[%s6] sm:$0xff]
      %v486 = vld [vmem:[%s6 + $0x8] sm:$0xff]
      %v487 = vld [vmem:[%s7] sm:$0xff]
      %v488 = vld [vmem:[%s7 + $0x8] sm:$0xff]
      %v489 = vld [vmem:[%s8] sm:$0xf]
      %v490 = vld [vmem:[%s8 + $0x4] sm:$0xf]
      %v491 = vld [vmem:[%s9] sm:$0xff]
      %v492 = vld [vmem:[%s9 + $0x8] sm:$0xff]
      %v493 = vld [vmem:[%s374] sm:$0xff]
      %v494 = vld [vmem:[%s374 + $0x8] sm:$0xff]
      %496 = vset.pattern.permute.xlu0 0
      %497 = vperm.xlu0 %496, %v483
      %v498 = vpop.permute.xlu0 %497
      %501 = vset.pattern.permute.xlu0 0
      %502 = vperm.xlu0 %501, %v484
      %v503 = vpop.permute.xlu0 %502
      %v507 = vunpack.c.l.b16 %v481
      %v508 = vunpack.c.l.b16 %v482
      %v509 = vpack.c.b16 %v508, %v507
      %v512 = vunpack.c.l.b16 %v493
      %v513 = vunpack.c.h.b16 %v493
      %v514 = vunpack.c.l.b16 %v494
      %v515 = vunpack.c.h.b16 %v494
      %v516 = vpack.c.b16 %v514, %v512
      %v517 = vpack.c.b16 %v515, %v513
      %vm520 = vcmask 130048
      %v522 = vsel %vm520, %v509, 0
      %524 = vmatprep.subr.bf16.mxu0 0
      %525 = vmatpush1.bf16.msra.mxu0 0
      %526 = vmatprep.subr.bf16.mxu0 0
      %527 = vmatpush1.bf16.msra.mxu0 0
      %528 = vmatprep.subr.bf16.mxu0 0
      %529 = vmatpush1.bf16.msra.mxu0 0
      %530 = vmatprep.subr.bf16.mxu0 0
      %531 = vmatpush1.bf16.msra.mxu0 0
      %532 = vmatprep.subr.bf16.mxu0 0
      %533 = vmatpush1.bf16.msra.mxu0 0
      %534 = vmatprep.subr.bf16.mxu0 0
      %535 = vmatpush1.bf16.msra.mxu0 0
      %536 = vmatprep.subr.bf16.mxu0 0
      %537 = vmatpush1.bf16.msra.mxu0 0
      %538 = vmatprep.subr.bf16.mxu0 %v517
      %539 = vmatpush1.bf16.msra.mxu0 %v516
      %540 = vmatprep.subr.bf16.mxu0 0
      %541 = vmatpush2.bf16.msra.mxu0 0
      %542 = vmatprep.subr.bf16.mxu0 0
      %543 = vmatpush2.bf16.msra.mxu0 0
      %544 = vmatprep.subr.bf16.mxu0 0
      %545 = vmatpush2.bf16.msra.mxu0 0
      %546 = vmatprep.subr.bf16.mxu0 0
      %547 = vmatpush2.bf16.msra.mxu0 0
      %548 = vmatprep.subr.bf16.mxu0 0
      %549 = vmatpush2.bf16.msra.mxu0 0
      %550 = vmatprep.subr.bf16.mxu0 0
      %551 = vmatpush2.bf16.msra.mxu0 0
      %552 = vmatprep.subr.bf16.mxu0 0
      %553 = vmatpush2.bf16.msra.mxu0 0
      %554 = vmatprep.subr.bf16.mxu0 0
      %555 = vmatpush2.bf16.msra.mxu0 0
      %556 = vmatprep.mubr.bf16.mxu0 0
      %557 = vmatmul.mubr.bf16.gmra.mxu0 %v522
      %v558 = vpop.f32.mrf.mxu0
      %v559 = vadd.f32 %v498, %v558
      %v560 = vpop.f32.mrf.mxu0
      %v561 = vadd.f32 %v498, %v560
      %v562 = vpop.f32.mrf.mxu0
      %v563 = vadd.f32 %v503, %v562
      %v564 = vpop.f32.mrf.mxu0
      %v565 = vadd.f32 %v503, %v564
      %566 = vdwg.mxu0
      %v567 = vmax.f32 %v559, 0.0
      %v568 = vmax.f32 %v561, 0.0
      %v569 = vmax.f32 %v563, 0.0
      %v570 = vmax.f32 %v565, 0.0
      %v571 = vpack.c.bf16 %v569, %v567
      %v572 = vpack.c.bf16 %v570, %v568
      %v637 = vunpack.c.l.b16 %v381
      %v638 = vunpack.c.h.b16 %v381
      %v639 = vunpack.c.l.b16 %v382
      %v640 = vunpack.c.l.b16 %v383
      %v641 = vunpack.c.h.b16 %v383
      %v642 = vunpack.c.l.b16 %v384
      %v643 = vunpack.c.l.b16 %v385
      %v644 = vunpack.c.h.b16 %v385
      %v645 = vunpack.c.l.b16 %v386
      %v646 = vunpack.c.l.b16 %v387
      %v647 = vunpack.c.h.b16 %v387
      %v648 = vunpack.c.l.b16 %v388
      %v649 = vunpack.c.l.b16 %v389
      %v650 = vunpack.c.h.b16 %v389
      %v651 = vunpack.c.l.b16 %v390
      %v652 = vunpack.c.l.b16 %v391
      %v653 = vunpack.c.h.b16 %v391
      %v654 = vunpack.c.l.b16 %v392
      %v655 = vunpack.c.l.b16 %v393
      %v656 = vunpack.c.h.b16 %v393
      %v657 = vunpack.c.l.b16 %v394
      %v658 = vunpack.c.l.b16 %v395
      %v659 = vunpack.c.h.b16 %v395
      %v660 = vunpack.c.l.b16 %v396
      %v661 = vunpack.c.l.b16 %v397
      %v662 = vunpack.c.h.b16 %v397
      %v663 = vunpack.c.l.b16 %v398
      %v664 = vunpack.c.l.b16 %v399
      %v665 = vunpack.c.h.b16 %v399
      %v666 = vunpack.c.l.b16 %v400
      %v667 = vunpack.c.l.b16 %v401
      %v668 = vunpack.c.h.b16 %v401
      %v669 = vunpack.c.l.b16 %v402
      %v670 = vunpack.c.l.b16 %v403
      %v671 = vunpack.c.h.b16 %v403
      %v672 = vunpack.c.l.b16 %v404
      %v673 = vunpack.c.l.b16 %v405
      %v674 = vunpack.c.h.b16 %v405
      %v675 = vunpack.c.l.b16 %v406
      %v676 = vunpack.c.l.b16 %v407
      %v677 = vunpack.c.h.b16 %v407
      %v678 = vunpack.c.l.b16 %v408
      %v679 = vunpack.c.l.b16 %v409
      %v680 = vunpack.c.h.b16 %v409
      %v681 = vunpack.c.l.b16 %v410
      %v682 = vunpack.c.l.b16 %v411
      %v683 = vunpack.c.h.b16 %v411
      %v684 = vunpack.c.l.b16 %v412
      %v685 = vunpack.c.l.b16 %v413
      %v686 = vunpack.c.h.b16 %v413
      %v687 = vunpack.c.l.b16 %v414
      %v688 = vunpack.c.l.b16 %v415
      %v689 = vunpack.c.h.b16 %v415
      %v690 = vunpack.c.l.b16 %v416
      %v691 = vunpack.c.l.b16 %v417
      %v692 = vunpack.c.h.b16 %v417
      %v693 = vunpack.c.l.b16 %v418
      %v694 = vunpack.c.l.b16 %v419
      %v695 = vunpack.c.h.b16 %v419
      %v696 = vunpack.c.l.b16 %v420
      %v697 = vunpack.c.l.b16 %v421
      %v698 = vunpack.c.h.b16 %v421
      %v699 = vunpack.c.l.b16 %v422
      %v700 = vunpack.c.l.b16 %v423
      %v701 = vunpack.c.h.b16 %v423
      %v702 = vunpack.c.l.b16 %v424
      %v703 = vunpack.c.l.b16 %v425
      %v704 = vunpack.c.h.b16 %v425
      %v705 = vunpack.c.l.b16 %v426
      %v706 = vunpack.c.l.b16 %v427
      %v707 = vunpack.c.h.b16 %v427
      %v708 = vunpack.c.l.b16 %v428
      %v709 = vunpack.c.l.b16 %v429
      %v710 = vunpack.c.h.b16 %v429
      %v711 = vunpack.c.l.b16 %v430
      %v712 = vunpack.c.l.b16 %v431
      %v713 = vunpack.c.h.b16 %v431
      %v714 = vunpack.c.l.b16 %v432
      %v715 = vunpack.c.l.b16 %v433
      %v716 = vunpack.c.h.b16 %v433
      %v717 = vunpack.c.l.b16 %v434
      %v718 = vunpack.c.l.b16 %v435
      %v719 = vunpack.c.h.b16 %v435
      %v720 = vunpack.c.l.b16 %v436
      %v721 = vunpack.c.l.b16 %v437
      %v722 = vunpack.c.h.b16 %v437
      %v723 = vunpack.c.l.b16 %v438
      %v724 = vunpack.c.l.b16 %v439
      %v725 = vunpack.c.h.b16 %v439
      %v726 = vunpack.c.l.b16 %v440
      %v727 = vunpack.c.l.b16 %v441
      %v728 = vunpack.c.h.b16 %v441
      %v729 = vunpack.c.l.b16 %v442
      %v730 = vunpack.c.l.b16 %v443
      %v731 = vunpack.c.h.b16 %v443
      %v732 = vunpack.c.l.b16 %v444
      %v733 = vpack.c.b16 %v640, %v637
      %v734 = vpack.c.b16 %v641, %v638
      %v735 = vpack.c.b16 %v642, %v639
      %v736 = vpack.c.b16 %v646, %v643
      %v737 = vpack.c.b16 %v647, %v644
      %v738 = vpack.c.b16 %v648, %v645
      %v739 = vpack.c.b16 %v652, %v649
      %v740 = vpack.c.b16 %v653, %v650
      %v741 = vpack.c.b16 %v654, %v651
      %v742 = vpack.c.b16 %v658, %v655
      %v743 = vpack.c.b16 %v659, %v656
      %v744 = vpack.c.b16 %v660, %v657
      %v745 = vpack.c.b16 %v664, %v661
      %v746 = vpack.c.b16 %v665, %v662
      %v747 = vpack.c.b16 %v666, %v663
      %v748 = vpack.c.b16 %v670, %v667
      %v749 = vpack.c.b16 %v671, %v668
      %v750 = vpack.c.b16 %v672, %v669
      %v751 = vpack.c.b16 %v676, %v673
      %v752 = vpack.c.b16 %v677, %v674
      %v753 = vpack.c.b16 %v678, %v675
      %v754 = vpack.c.b16 %v682, %v679
      %v755 = vpack.c.b16 %v683, %v680
      %v756 = vpack.c.b16 %v684, %v681
      %v757 = vpack.c.b16 %v688, %v685
      %v758 = vpack.c.b16 %v689, %v686
      %v759 = vpack.c.b16 %v690, %v687
      %v760 = vpack.c.b16 %v694, %v691
      %v761 = vpack.c.b16 %v695, %v692
      %v762 = vpack.c.b16 %v696, %v693
      %v763 = vpack.c.b16 %v700, %v697
      %v764 = vpack.c.b16 %v701, %v698
      %v765 = vpack.c.b16 %v702, %v699
      %v766 = vpack.c.b16 %v706, %v703
      %v767 = vpack.c.b16 %v707, %v704
      %v768 = vpack.c.b16 %v708, %v705
      %v769 = vpack.c.b16 %v712, %v709
      %v770 = vpack.c.b16 %v713, %v710
      %v771 = vpack.c.b16 %v714, %v711
      %v772 = vpack.c.b16 %v718, %v715
      %v773 = vpack.c.b16 %v719, %v716
      %v774 = vpack.c.b16 %v720, %v717
      %v775 = vpack.c.b16 %v724, %v721
      %v776 = vpack.c.b16 %v725, %v722
      %v777 = vpack.c.b16 %v726, %v723
      %v778 = vpack.c.b16 %v730, %v727
      %v779 = vpack.c.b16 %v731, %v728
      %v780 = vpack.c.b16 %v732, %v729
      %829 = vmatprep.subr.bf16.mxu0 %v755
      %830 = vmatpush1.bf16.msra.mxu0 %v754
      %831 = vmatprep.subr.bf16.mxu0 %v752
      %832 = vmatpush1.bf16.msra.mxu0 %v751
      %833 = vmatprep.subr.bf16.mxu0 %v749
      %834 = vmatpush1.bf16.msra.mxu0 %v748
      %835 = vmatprep.subr.bf16.mxu0 %v746
      %836 = vmatpush1.bf16.msra.mxu0 %v745
      %837 = vmatprep.subr.bf16.mxu0 %v743
      %838 = vmatpush1.bf16.msra.mxu0 %v742
      %839 = vmatprep.subr.bf16.mxu0 %v740
      %840 = vmatpush1.bf16.msra.mxu0 %v739
      %841 = vmatprep.subr.bf16.mxu0 %v737
      %842 = vmatpush1.bf16.msra.mxu0 %v736
      %843 = vmatprep.subr.bf16.mxu0 %v734
      %844 = vmatpush1.bf16.msra.mxu0 %v733
      %845 = vmatprep.subr.bf16.mxu0 %v779
      %846 = vmatpush2.bf16.msra.mxu0 %v778
      %847 = vmatprep.subr.bf16.mxu0 %v776
      %848 = vmatpush2.bf16.msra.mxu0 %v775
      %849 = vmatprep.subr.bf16.mxu0 %v773
      %850 = vmatpush2.bf16.msra.mxu0 %v772
      %851 = vmatprep.subr.bf16.mxu0 %v770
      %852 = vmatpush2.bf16.msra.mxu0 %v769
      %853 = vmatprep.subr.bf16.mxu0 %v767
      %854 = vmatpush2.bf16.msra.mxu0 %v766
      %855 = vmatprep.subr.bf16.mxu0 %v764
      %856 = vmatpush2.bf16.msra.mxu0 %v763
      %857 = vmatprep.subr.bf16.mxu0 %v761
      %858 = vmatpush2.bf16.msra.mxu0 %v760
      %859 = vmatprep.subr.bf16.mxu0 %v758
      %860 = vmatpush2.bf16.msra.mxu0 %v757
      %861 = vmatprep.mubr.bf16.mxu0 %v572
      %862 = vmatmul.mubr.bf16.gmra.mxu0 %v571
      %v863 = vpop.f32.mrf.mxu0
      %v864 = vadd.f32 0.0, %v863
      %v865 = vpop.f32.mrf.mxu0
      %v866 = vadd.f32 0.0, %v865
      %v867 = vpop.f32.mrf.mxu0
      %v868 = vadd.f32 0.0, %v867
      %v869 = vpop.f32.mrf.mxu0
      %v870 = vadd.f32 0.0, %v869
      %871 = vdwg.mxu0
      %872 = vmatprep.subr.bf16.mxu0 0
      %873 = vmatpush1.bf16.msra.mxu0 %v756
      %874 = vmatprep.subr.bf16.mxu0 0
      %875 = vmatpush1.bf16.msra.mxu0 %v753
      %876 = vmatprep.subr.bf16.mxu0 0
      %877 = vmatpush1.bf16.msra.mxu0 %v750
      %878 = vmatprep.subr.bf16.mxu0 0
      %879 = vmatpush1.bf16.msra.mxu0 %v747
      %880 = vmatprep.subr.bf16.mxu0 0
      %881 = vmatpush1.bf16.msra.mxu0 %v744
      %882 = vmatprep.subr.bf16.mxu0 0
      %883 = vmatpush1.bf16.msra.mxu0 %v741
      %884 = vmatprep.subr.bf16.mxu0 0
      %885 = vmatpush1.bf16.msra.mxu0 %v738
      %886 = vmatprep.subr.bf16.mxu0 0
      %887 = vmatpush1.bf16.msra.mxu0 %v735
      %888 = vmatprep.subr.bf16.mxu0 0
      %889 = vmatpush2.bf16.msra.mxu0 %v780
      %890 = vmatprep.subr.bf16.mxu0 0
      %891 = vmatpush2.bf16.msra.mxu0 %v777
      %892 = vmatprep.subr.bf16.mxu0 0
      %893 = vmatpush2.bf16.msra.mxu0 %v774
      %894 = vmatprep.subr.bf16.mxu0 0
      %895 = vmatpush2.bf16.msra.mxu0 %v771
      %896 = vmatprep.subr.bf16.mxu0 0
      %897 = vmatpush2.bf16.msra.mxu0 %v768
      %898 = vmatprep.subr.bf16.mxu0 0
      %899 = vmatpush2.bf16.msra.mxu0 %v765
      %900 = vmatprep.subr.bf16.mxu0 0
      %901 = vmatpush2.bf16.msra.mxu0 %v762
      %902 = vmatprep.subr.bf16.mxu0 0
      %903 = vmatpush2.bf16.msra.mxu0 %v759
      %904 = vmatprep.mubr.bf16.mxu0 %v572
      %905 = vmatmul.mubr.bf16.gmra.mxu0 %v571
      %v906 = vpop.f32.mrf.mxu0
      %v907 = vadd.f32 0.0, %v906
      %v908 = vpop.f32.mrf.mxu0
      %v909 = vpop.f32.mrf.mxu0
      %v910 = vadd.f32 0.0, %v909
      %v911 = vpop.f32.mrf.mxu0
      %912 = vdwg.mxu0
      %914 = vset.pattern.permute.xlu0 0
      %915 = vperm.xlu0 %914, %v485
      %v916 = vpop.permute.xlu0 %915
      %919 = vset.pattern.permute.xlu0 0
      %920 = vperm.xlu0 %919, %v486
      %v921 = vpop.permute.xlu0 %920
      %v923 = vmul.f32 %v864, %v916
      %v924 = vmul.f32 %v866, %v916
      %v925 = vmul.f32 %v907, %v916
      %v926 = vmul.f32 %v868, %v921
      %v927 = vmul.f32 %v870, %v921
      %v928 = vmul.f32 %v910, %v921
      %929 = vset.pattern.permute.xlu0 1
      %930 = vperm.xlu0 %929, %v485
      %v931 = vpop.permute.xlu0 %930
      %933 = vset.pattern.permute.xlu0 1
      %934 = vperm.xlu0 %933, %v486
      %v935 = vpop.permute.xlu0 %934
      %v937 = vmul.f32 %v864, %v931
      %v938 = vmul.f32 %v866, %v931
      %v939 = vmul.f32 %v907, %v931
      %v940 = vmul.f32 %v868, %v935
      %v941 = vmul.f32 %v870, %v935
      %v942 = vmul.f32 %v910, %v935
      %949 = vrot.lane.b32.xlu0 %v937, 127
      %v950 = vpop.permute.xlu0 %949
      %951 = vrot.lane.b32.xlu0 %v938, 127
      %v952 = vpop.permute.xlu0 %951
      %953 = vrot.lane.b32.xlu0 %v939, 127
      %v954 = vpop.permute.xlu0 %953
      %955 = vrot.lane.b32.xlu0 %v940, 127
      %v956 = vpop.permute.xlu0 %955
      %957 = vrot.lane.b32.xlu0 %v941, 127
      %v958 = vpop.permute.xlu0 %957
      %959 = vrot.lane.b32.xlu0 %v942, 127
      %v960 = vpop.permute.xlu0 %959
      %vm961 = vcmask 1039360
      %v962 = vsel %vm961, %v950, %v952
      %v963 = vsel %vm961, %v952, %v954
      %v964 = vsel %vm961, %v956, %v958
      %v965 = vsel %vm961, %v958, %v960
      %v972 = vadd.f32 %v923, %v962
      %v973 = vadd.f32 %v924, %v963
      %v974 = vadd.f32 %v925, %v954
      %v975 = vadd.f32 %v926, %v964
      %v976 = vadd.f32 %v927, %v965
      %v977 = vadd.f32 %v928, %v960
      %978 = vset.pattern.permute.xlu0 2
      %979 = vperm.xlu0 %978, %v485
      %v980 = vpop.permute.xlu0 %979
      %982 = vset.pattern.permute.xlu0 2
      %983 = vperm.xlu0 %982, %v486
      %v984 = vpop.permute.xlu0 %983
      %v986 = vmul.f32 %v864, %v980
      %v987 = vmul.f32 %v866, %v980
      %v988 = vmul.f32 %v907, %v980
      %v989 = vmul.f32 %v868, %v984
      %v990 = vmul.f32 %v870, %v984
      %v991 = vmul.f32 %v910, %v984
      %998 = vrot.lane.b32.xlu0 %v986, 126
      %v999 = vpop.permute.xlu0 %998
      %1000 = vrot.lane.b32.xlu0 %v987, 126
      %v1001 = vpop.permute.xlu0 %1000
      %1002 = vrot.lane.b32.xlu0 %v988, 126
      %v1003 = vpop.permute.xlu0 %1002
      %1004 = vrot.lane.b32.xlu0 %v989, 126
      %v1005 = vpop.permute.xlu0 %1004
      %1006 = vrot.lane.b32.xlu0 %v990, 126
      %v1007 = vpop.permute.xlu0 %1006
      %1008 = vrot.lane.b32.xlu0 %v991, 126
      %v1009 = vpop.permute.xlu0 %1008
      %vm1010 = vcmask 1031168
      %v1011 = vsel %vm1010, %v999, %v1001
      %v1012 = vsel %vm1010, %v1001, %v1003
      %v1013 = vsel %vm1010, %v1005, %v1007
      %v1014 = vsel %vm1010, %v1007, %v1009
      %v1021 = vadd.f32 %v972, %v1011
      %v1022 = vadd.f32 %v973, %v1012
      %v1023 = vadd.f32 %v974, %v1003
      %v1024 = vadd.f32 %v975, %v1013
      %v1025 = vadd.f32 %v976, %v1014
      %v1026 = vadd.f32 %v977, %v1009
      %1027 = vset.pattern.permute.xlu0 3
      %1028 = vperm.xlu0 %1027, %v485
      %v1029 = vpop.permute.xlu0 %1028
      %1031 = vset.pattern.permute.xlu0 3
      %1032 = vperm.xlu0 %1031, %v486
      %v1033 = vpop.permute.xlu0 %1032
      %v1035 = vmul.f32 %v864, %v1029
      %v1036 = vmul.f32 %v866, %v1029
      %v1037 = vmul.f32 %v907, %v1029
      %v1038 = vmul.f32 %v868, %v1033
      %v1039 = vmul.f32 %v870, %v1033
      %v1040 = vmul.f32 %v910, %v1033
      %1047 = vrot.lane.b32.xlu0 %v1035, 110
      %v1048 = vpop.permute.xlu0 %1047
      %1049 = vrot.lane.b32.xlu0 %v1036, 110
      %v1050 = vpop.permute.xlu0 %1049
      %1051 = vrot.lane.b32.xlu0 %v1037, 110
      %v1052 = vpop.permute.xlu0 %1051
      %1053 = vrot.lane.b32.xlu0 %v1038, 110
      %v1054 = vpop.permute.xlu0 %1053
      %1055 = vrot.lane.b32.xlu0 %v1039, 110
      %v1056 = vpop.permute.xlu0 %1055
      %1057 = vrot.lane.b32.xlu0 %v1040, 110
      %v1058 = vpop.permute.xlu0 %1057
      %vm1059 = vcmask 900096
      %v1060 = vsel %vm1059, %v1048, %v1050
      %v1061 = vsel %vm1059, %v1050, %v1052
      %v1062 = vsel %vm1059, %v1054, %v1056
      %v1063 = vsel %vm1059, %v1056, %v1058
      %v1070 = vadd.f32 %v1021, %v1060
      %v1071 = vadd.f32 %v1022, %v1061
      %v1072 = vadd.f32 %v1023, %v1052
      %v1073 = vadd.f32 %v1024, %v1062
      %v1074 = vadd.f32 %v1025, %v1063
      %v1075 = vadd.f32 %v1026, %v1058
      %1076 = vset.pattern.permute.xlu0 4
      %1077 = vperm.xlu0 %1076, %v485
      %v1078 = vpop.permute.xlu0 %1077
      %1080 = vset.pattern.permute.xlu0 4
      %1081 = vperm.xlu0 %1080, %v486
      %v1082 = vpop.permute.xlu0 %1081
      %v1084 = vmul.f32 %v864, %v1078
      %v1085 = vmul.f32 %v866, %v1078
      %v1086 = vmul.f32 %v907, %v1078
      %v1087 = vmul.f32 %v868, %v1082
      %v1088 = vmul.f32 %v870, %v1082
      %v1089 = vmul.f32 %v910, %v1082
      %1096 = vrot.lane.b32.xlu0 %v1084, 109
      %v1097 = vpop.permute.xlu0 %1096
      %1098 = vrot.lane.b32.xlu0 %v1085, 109
      %v1099 = vpop.permute.xlu0 %1098
      %1100 = vrot.lane.b32.xlu0 %v1086, 109
      %v1101 = vpop.permute.xlu0 %1100
      %1102 = vrot.lane.b32.xlu0 %v1087, 109
      %v1103 = vpop.permute.xlu0 %1102
      %1104 = vrot.lane.b32.xlu0 %v1088, 109
      %v1105 = vpop.permute.xlu0 %1104
      %1106 = vrot.lane.b32.xlu0 %v1089, 109
      %v1107 = vpop.permute.xlu0 %1106
      %vm1108 = vcmask 891904
      %v1109 = vsel %vm1108, %v1097, %v1099
      %v1110 = vsel %vm1108, %v1099, %v1101
      %v1111 = vsel %vm1108, %v1103, %v1105
      %v1112 = vsel %vm1108, %v1105, %v1107
      %v1119 = vadd.f32 %v1070, %v1109
      %v1120 = vadd.f32 %v1071, %v1110
      %v1121 = vadd.f32 %v1072, %v1101
      %v1122 = vadd.f32 %v1073, %v1111
      %v1123 = vadd.f32 %v1074, %v1112
      %v1124 = vadd.f32 %v1075, %v1107
      %1125 = vset.pattern.permute.xlu0 5
      %1126 = vperm.xlu0 %1125, %v485
      %v1127 = vpop.permute.xlu0 %1126
      %1129 = vset.pattern.permute.xlu0 5
      %1130 = vperm.xlu0 %1129, %v486
      %v1131 = vpop.permute.xlu0 %1130
      %v1133 = vmul.f32 %v864, %v1127
      %v1134 = vmul.f32 %v866, %v1127
      %v1135 = vmul.f32 %v907, %v1127
      %v1136 = vmul.f32 %v868, %v1131
      %v1137 = vmul.f32 %v870, %v1131
      %v1138 = vmul.f32 %v910, %v1131
      %1145 = vrot.lane.b32.xlu0 %v1133, 108
      %v1146 = vpop.permute.xlu0 %1145
      %1147 = vrot.lane.b32.xlu0 %v1134, 108
      %v1148 = vpop.permute.xlu0 %1147
      %1149 = vrot.lane.b32.xlu0 %v1135, 108
      %v1150 = vpop.permute.xlu0 %1149
      %1151 = vrot.lane.b32.xlu0 %v1136, 108
      %v1152 = vpop.permute.xlu0 %1151
      %1153 = vrot.lane.b32.xlu0 %v1137, 108
      %v1154 = vpop.permute.xlu0 %1153
      %1155 = vrot.lane.b32.xlu0 %v1138, 108
      %v1156 = vpop.permute.xlu0 %1155
      %vm1157 = vcmask 883712
      %v1158 = vsel %vm1157, %v1146, %v1148
      %v1159 = vsel %vm1157, %v1148, %v1150
      %v1160 = vsel %vm1157, %v1152, %v1154
      %v1161 = vsel %vm1157, %v1154, %v1156
      %v1168 = vadd.f32 %v1119, %v1158
      %v1169 = vadd.f32 %v1120, %v1159
      %v1170 = vadd.f32 %v1121, %v1150
      %v1171 = vadd.f32 %v1122, %v1160
      %v1172 = vadd.f32 %v1123, %v1161
      %v1173 = vadd.f32 %v1124, %v1156
      %1174 = vset.pattern.permute.xlu0 6
      %1175 = vperm.xlu0 %1174, %v485
      %v1176 = vpop.permute.xlu0 %1175
      %1178 = vset.pattern.permute.xlu0 6
      %1179 = vperm.xlu0 %1178, %v486
      %v1180 = vpop.permute.xlu0 %1179
      %v1182 = vmul.f32 %v864, %v1176
      %v1183 = vmul.f32 %v866, %v1176
      %v1184 = vmul.f32 %v907, %v1176
      %v1185 = vmul.f32 %v868, %v1180
      %v1186 = vmul.f32 %v870, %v1180
      %v1187 = vmul.f32 %v910, %v1180
      %1194 = vrot.lane.b32.xlu0 %v1182, 92
      %v1195 = vpop.permute.xlu0 %1194
      %1196 = vrot.lane.b32.xlu0 %v1183, 92
      %v1197 = vpop.permute.xlu0 %1196
      %1198 = vrot.lane.b32.xlu0 %v1184, 92
      %v1199 = vpop.permute.xlu0 %1198
      %1200 = vrot.lane.b32.xlu0 %v1185, 92
      %v1201 = vpop.permute.xlu0 %1200
      %1202 = vrot.lane.b32.xlu0 %v1186, 92
      %v1203 = vpop.permute.xlu0 %1202
      %1204 = vrot.lane.b32.xlu0 %v1187, 92
      %v1205 = vpop.permute.xlu0 %1204
      %vm1206 = vcmask 752640
      %v1207 = vsel %vm1206, %v1195, %v1197
      %v1208 = vsel %vm1206, %v1197, %v1199
      %v1209 = vsel %vm1206, %v1201, %v1203
      %v1210 = vsel %vm1206, %v1203, %v1205
      %v1217 = vadd.f32 %v1168, %v1207
      %v1218 = vadd.f32 %v1169, %v1208
      %v1219 = vadd.f32 %v1170, %v1199
      %v1220 = vadd.f32 %v1171, %v1209
      %v1221 = vadd.f32 %v1172, %v1210
      %v1222 = vadd.f32 %v1173, %v1205
      %1223 = vset.pattern.permute.xlu0 7
      %1224 = vperm.xlu0 %1223, %v485
      %v1225 = vpop.permute.xlu0 %1224
      %1227 = vset.pattern.permute.xlu0 7
      %1228 = vperm.xlu0 %1227, %v486
      %v1229 = vpop.permute.xlu0 %1228
      %v1231 = vmul.f32 %v864, %v1225
      %v1232 = vmul.f32 %v866, %v1225
      %v1233 = vmul.f32 %v907, %v1225
      %v1234 = vmul.f32 %v868, %v1229
      %v1235 = vmul.f32 %v870, %v1229
      %v1236 = vmul.f32 %v910, %v1229
      %1243 = vrot.lane.b32.xlu0 %v1231, 91
      %v1244 = vpop.permute.xlu0 %1243
      %1245 = vrot.lane.b32.xlu0 %v1232, 91
      %v1246 = vpop.permute.xlu0 %1245
      %1247 = vrot.lane.b32.xlu0 %v1233, 91
      %v1248 = vpop.permute.xlu0 %1247
      %1249 = vrot.lane.b32.xlu0 %v1234, 91
      %v1250 = vpop.permute.xlu0 %1249
      %1251 = vrot.lane.b32.xlu0 %v1235, 91
      %v1252 = vpop.permute.xlu0 %1251
      %1253 = vrot.lane.b32.xlu0 %v1236, 91
      %v1254 = vpop.permute.xlu0 %1253
      %vm1255 = vcmask 744448
      %v1256 = vsel %vm1255, %v1244, %v1246
      %v1257 = vsel %vm1255, %v1246, %v1248
      %v1258 = vsel %vm1255, %v1250, %v1252
      %v1259 = vsel %vm1255, %v1252, %v1254
      %v1266 = vadd.f32 %v1217, %v1256
      %v1267 = vadd.f32 %v1218, %v1257
      %v1268 = vadd.f32 %v1219, %v1248
      %v1269 = vadd.f32 %v1220, %v1258
      %v1270 = vadd.f32 %v1221, %v1259
      %v1271 = vadd.f32 %v1222, %v1254
      %1272 = vset.pattern.permute.xlu0 8
      %1273 = vperm.xlu0 %1272, %v485
      %v1274 = vpop.permute.xlu0 %1273
      %1276 = vset.pattern.permute.xlu0 8
      %1277 = vperm.xlu0 %1276, %v486
      %v1278 = vpop.permute.xlu0 %1277
      %v1280 = vmul.f32 %v864, %v1274
      %v1281 = vmul.f32 %v866, %v1274
      %v1282 = vmul.f32 %v907, %v1274
      %v1283 = vmul.f32 %v868, %v1278
      %v1284 = vmul.f32 %v870, %v1278
      %v1285 = vmul.f32 %v910, %v1278
      %1292 = vrot.lane.b32.xlu0 %v1280, 90
      %v1293 = vpop.permute.xlu0 %1292
      %1294 = vrot.lane.b32.xlu0 %v1281, 90
      %v1295 = vpop.permute.xlu0 %1294
      %1296 = vrot.lane.b32.xlu0 %v1282, 90
      %v1297 = vpop.permute.xlu0 %1296
      %1298 = vrot.lane.b32.xlu0 %v1283, 90
      %v1299 = vpop.permute.xlu0 %1298
      %1300 = vrot.lane.b32.xlu0 %v1284, 90
      %v1301 = vpop.permute.xlu0 %1300
      %1302 = vrot.lane.b32.xlu0 %v1285, 90
      %v1303 = vpop.permute.xlu0 %1302
      %vm1304 = vcmask 736256
      %v1305 = vsel %vm1304, %v1293, %v1295
      %v1306 = vsel %vm1304, %v1295, %v1297
      %v1307 = vsel %vm1304, %v1299, %v1301
      %v1308 = vsel %vm1304, %v1301, %v1303
      %v1315 = vadd.f32 %v1266, %v1305
      %v1316 = vadd.f32 %v1267, %v1306
      %v1317 = vadd.f32 %v1268, %v1297
      %v1318 = vadd.f32 %v1269, %v1307
      %v1319 = vadd.f32 %v1270, %v1308
      %v1320 = vadd.f32 %v1271, %v1303
      %v1321 = vpack.c.bf16 %v1318, %v1315
      %v1322 = vpack.c.bf16 %v1319, %v1316
      %v1323 = vpack.c.bf16 %v1320, %v1317
      %1325 = vset.pattern.permute.xlu0 0
      %1326 = vperm.xlu0 %1325, %v487
      %v1327 = vpop.permute.xlu0 %1326
      %1330 = vset.pattern.permute.xlu0 0
      %1331 = vperm.xlu0 %1330, %v488
      %v1332 = vpop.permute.xlu0 %1331
      %v1370 = vunpack.c.l.b16 %v445
      %v1371 = vunpack.c.h.b16 %v445
      %v1372 = vunpack.c.l.b16 %v446
      %v1373 = vunpack.c.h.b16 %v446
      %v1374 = vunpack.c.l.b16 %v447
      %v1375 = vunpack.c.h.b16 %v447
      %v1376 = vunpack.c.l.b16 %v448
      %v1377 = vunpack.c.h.b16 %v448
      %v1378 = vunpack.c.l.b16 %v449
      %v1379 = vunpack.c.h.b16 %v449
      %v1380 = vunpack.c.l.b16 %v450
      %v1381 = vunpack.c.h.b16 %v450
      %v1382 = vunpack.c.l.b16 %v451
      %v1383 = vunpack.c.h.b16 %v451
      %v1384 = vunpack.c.l.b16 %v452
      %v1385 = vunpack.c.h.b16 %v452
      %v1386 = vunpack.c.l.b16 %v453
      %v1387 = vunpack.c.h.b16 %v453
      %v1388 = vunpack.c.l.b16 %v454
      %v1389 = vunpack.c.h.b16 %v454
      %v1390 = vunpack.c.l.b16 %v455
      %v1391 = vunpack.c.h.b16 %v455
      %v1392 = vunpack.c.l.b16 %v456
      %v1393 = vunpack.c.h.b16 %v456
      %v1394 = vunpack.c.l.b16 %v457
      %v1395 = vunpack.c.h.b16 %v457
      %v1396 = vunpack.c.l.b16 %v458
      %v1397 = vunpack.c.h.b16 %v458
      %v1398 = vunpack.c.l.b16 %v459
      %v1399 = vunpack.c.h.b16 %v459
      %v1400 = vunpack.c.l.b16 %v460
      %v1401 = vunpack.c.h.b16 %v460
      %v1402 = vunpack.c.l.b16 %v461
      %v1403 = vunpack.c.h.b16 %v461
      %v1404 = vunpack.c.l.b16 %v462
      %v1405 = vunpack.c.h.b16 %v462
      %v1406 = vunpack.c.l.b16 %v463
      %v1407 = vunpack.c.h.b16 %v463
      %v1408 = vunpack.c.l.b16 %v464
      %v1409 = vunpack.c.h.b16 %v464
      %v1410 = vunpack.c.l.b16 %v465
      %v1411 = vunpack.c.h.b16 %v465
      %v1412 = vunpack.c.l.b16 %v466
      %v1413 = vunpack.c.h.b16 %v466
      %v1414 = vunpack.c.l.b16 %v467
      %v1415 = vunpack.c.h.b16 %v467
      %v1416 = vunpack.c.l.b16 %v468
      %v1417 = vunpack.c.h.b16 %v468
      %v1418 = vunpack.c.l.b16 %v469
      %v1419 = vunpack.c.h.b16 %v469
      %v1420 = vunpack.c.l.b16 %v470
      %v1421 = vunpack.c.h.b16 %v470
      %v1422 = vunpack.c.l.b16 %v471
      %v1423 = vunpack.c.h.b16 %v471
      %v1424 = vunpack.c.l.b16 %v472
      %v1425 = vunpack.c.h.b16 %v472
      %v1426 = vunpack.c.l.b16 %v473
      %v1427 = vunpack.c.h.b16 %v473
      %v1428 = vunpack.c.l.b16 %v474
      %v1429 = vunpack.c.h.b16 %v474
      %v1430 = vunpack.c.l.b16 %v475
      %v1431 = vunpack.c.h.b16 %v475
      %v1432 = vunpack.c.l.b16 %v476
      %v1433 = vunpack.c.h.b16 %v476
      %v1434 = vunpack.c.l.b16 %v477
      %v1435 = vunpack.c.h.b16 %v477
      %v1436 = vunpack.c.l.b16 %v478
      %v1437 = vunpack.c.h.b16 %v478
      %v1438 = vunpack.c.l.b16 %v479
      %v1439 = vunpack.c.h.b16 %v479
      %v1440 = vunpack.c.l.b16 %v480
      %v1441 = vunpack.c.h.b16 %v480
      %v1442 = vpack.c.b16 %v1372, %v1370
      %v1443 = vpack.c.b16 %v1373, %v1371
      %v1444 = vpack.c.b16 %v1376, %v1374
      %v1445 = vpack.c.b16 %v1377, %v1375
      %v1446 = vpack.c.b16 %v1380, %v1378
      %v1447 = vpack.c.b16 %v1381, %v1379
      %v1448 = vpack.c.b16 %v1384, %v1382
      %v1449 = vpack.c.b16 %v1385, %v1383
      %v1450 = vpack.c.b16 %v1388, %v1386
      %v1451 = vpack.c.b16 %v1389, %v1387
      %v1452 = vpack.c.b16 %v1392, %v1390
      %v1453 = vpack.c.b16 %v1393, %v1391
      %v1454 = vpack.c.b16 %v1396, %v1394
      %v1455 = vpack.c.b16 %v1397, %v1395
      %v1456 = vpack.c.b16 %v1400, %v1398
      %v1457 = vpack.c.b16 %v1401, %v1399
      %v1458 = vpack.c.b16 %v1404, %v1402
      %v1459 = vpack.c.b16 %v1405, %v1403
      %v1460 = vpack.c.b16 %v1408, %v1406
      %v1461 = vpack.c.b16 %v1409, %v1407
      %v1462 = vpack.c.b16 %v1412, %v1410
      %v1463 = vpack.c.b16 %v1413, %v1411
      %v1464 = vpack.c.b16 %v1416, %v1414
      %v1465 = vpack.c.b16 %v1417, %v1415
      %v1466 = vpack.c.b16 %v1420, %v1418
      %v1467 = vpack.c.b16 %v1421, %v1419
      %v1468 = vpack.c.b16 %v1424, %v1422
      %v1469 = vpack.c.b16 %v1425, %v1423
      %v1470 = vpack.c.b16 %v1428, %v1426
      %v1471 = vpack.c.b16 %v1429, %v1427
      %v1472 = vpack.c.b16 %v1432, %v1430
      %v1473 = vpack.c.b16 %v1433, %v1431
      %v1474 = vpack.c.b16 %v1436, %v1434
      %v1475 = vpack.c.b16 %v1437, %v1435
      %v1476 = vpack.c.b16 %v1440, %v1438
      %v1477 = vpack.c.b16 %v1441, %v1439
      %vm1512 = vcmask 244736
      %v1514 = vsel %vm1512, %v1323, 0
      %vm1516 = vcmask 1046528
      %v1518 = vsel %vm1516, %v1476, 0
      %v1521 = vsel %vm1516, %v1477, 0
      %1523 = vmatprep.subr.bf16.mxu0 %v1457
      %1524 = vmatpush1.bf16.msra.mxu0 %v1456
      %1525 = vmatprep.subr.bf16.mxu0 %v1455
      %1526 = vmatpush1.bf16.msra.mxu0 %v1454
      %1527 = vmatprep.subr.bf16.mxu0 %v1453
      %1528 = vmatpush1.bf16.msra.mxu0 %v1452
      %1529 = vmatprep.subr.bf16.mxu0 %v1451
      %1530 = vmatpush1.bf16.msra.mxu0 %v1450
      %1531 = vmatprep.subr.bf16.mxu0 %v1449
      %1532 = vmatpush1.bf16.msra.mxu0 %v1448
      %1533 = vmatprep.subr.bf16.mxu0 %v1447
      %1534 = vmatpush1.bf16.msra.mxu0 %v1446
      %1535 = vmatprep.subr.bf16.mxu0 %v1445
      %1536 = vmatpush1.bf16.msra.mxu0 %v1444
      %1537 = vmatprep.subr.bf16.mxu0 %v1443
      %1538 = vmatpush1.bf16.msra.mxu0 %v1442
      %1539 = vmatprep.subr.bf16.mxu0 %v1473
      %1540 = vmatpush2.bf16.msra.mxu0 %v1472
      %1541 = vmatprep.subr.bf16.mxu0 %v1471
      %1542 = vmatpush2.bf16.msra.mxu0 %v1470
      %1543 = vmatprep.subr.bf16.mxu0 %v1469
      %1544 = vmatpush2.bf16.msra.mxu0 %v1468
      %1545 = vmatprep.subr.bf16.mxu0 %v1467
      %1546 = vmatpush2.bf16.msra.mxu0 %v1466
      %1547 = vmatprep.subr.bf16.mxu0 %v1465
      %1548 = vmatpush2.bf16.msra.mxu0 %v1464
      %1549 = vmatprep.subr.bf16.mxu0 %v1463
      %1550 = vmatpush2.bf16.msra.mxu0 %v1462
      %1551 = vmatprep.subr.bf16.mxu0 %v1461
      %1552 = vmatpush2.bf16.msra.mxu0 %v1460
      %1553 = vmatprep.subr.bf16.mxu0 %v1459
      %1554 = vmatpush2.bf16.msra.mxu0 %v1458
      %1555 = vmatprep.mubr.bf16.mxu0 %v1322
      %1556 = vmatmul.mubr.bf16.gmra.mxu0 %v1321
      %v1557 = vpop.f32.mrf.mxu0
      %v1558 = vadd.f32 %v1327, %v1557
      %v1559 = vpop.f32.mrf.mxu0
      %v1560 = vadd.f32 %v1327, %v1559
      %v1561 = vpop.f32.mrf.mxu0
      %v1562 = vadd.f32 %v1332, %v1561
      %v1563 = vpop.f32.mrf.mxu0
      %v1564 = vadd.f32 %v1332, %v1563
      %1565 = vdwg.mxu0
      %1566 = vmatprep.subr.bf16.mxu0 0
      %1567 = vmatpush1.bf16.msra.mxu0 0
      %1568 = vmatprep.subr.bf16.mxu0 0
      %1569 = vmatpush1.bf16.msra.mxu0 0
      %1570 = vmatprep.subr.bf16.mxu0 0
      %1571 = vmatpush1.bf16.msra.mxu0 0
      %1572 = vmatprep.subr.bf16.mxu0 0
      %1573 = vmatpush1.bf16.msra.mxu0 0
      %1574 = vmatprep.subr.bf16.mxu0 0
      %1575 = vmatpush1.bf16.msra.mxu0 0
      %1576 = vmatprep.subr.bf16.mxu0 0
      %1577 = vmatpush1.bf16.msra.mxu0 0
      %1578 = vmatprep.subr.bf16.mxu0 %v1521
      %1579 = vmatpush1.bf16.msra.mxu0 %v1518
      %1580 = vmatprep.subr.bf16.mxu0 %v1475
      %1581 = vmatpush1.bf16.msra.mxu0 %v1474
      %1582 = vmatprep.subr.bf16.mxu0 0
      %1583 = vmatpush2.bf16.msra.mxu0 0
      %1584 = vmatprep.subr.bf16.mxu0 0
      %1585 = vmatpush2.bf16.msra.mxu0 0
      %1586 = vmatprep.subr.bf16.mxu0 0
      %1587 = vmatpush2.bf16.msra.mxu0 0
      %1588 = vmatprep.subr.bf16.mxu0 0
      %1589 = vmatpush2.bf16.msra.mxu0 0
      %1590 = vmatprep.subr.bf16.mxu0 0
      %1591 = vmatpush2.bf16.msra.mxu0 0
      %1592 = vmatprep.subr.bf16.mxu0 0
      %1593 = vmatpush2.bf16.msra.mxu0 0
      %1594 = vmatprep.subr.bf16.mxu0 0
      %1595 = vmatpush2.bf16.msra.mxu0 0
      %1596 = vmatprep.subr.bf16.mxu0 0
      %1597 = vmatpush2.bf16.msra.mxu0 0
      %1598 = vmatprep.mubr.bf16.mxu0 0
      %1599 = vmatmul.mubr.bf16.gmra.mxu0 %v1514
      %v1600 = vpop.f32.mrf.mxu0
      %v1601 = vadd.f32 %v1558, %v1600
      %v1602 = vpop.f32.mrf.mxu0
      %v1603 = vadd.f32 %v1560, %v1602
      %v1604 = vpop.f32.mrf.mxu0
      %v1605 = vadd.f32 %v1562, %v1604
      %v1606 = vpop.f32.mrf.mxu0
      %v1607 = vadd.f32 %v1564, %v1606
      %1608 = vdwg.mxu0
      %v1609 = vpack.c.bf16 %v1605, %v1601
      %v1610 = vpack.c.bf16 %v1607, %v1603
      %1612 = vset.pattern.permute.xlu0 0
      %1613 = vperm.xlu0 %1612, %v491
      %v1614 = vpop.permute.xlu0 %1613
      %1617 = vset.pattern.permute.xlu0 0
      %1618 = vperm.xlu0 %1617, %v492
      %v1619 = vpop.permute.xlu0 %1618
      %v1623 = vunpack.c.l.b16 %v489
      %v1624 = vunpack.c.l.b16 %v490
      %v1625 = vpack.c.b16 %v1624, %v1623
      %v1627 = vsel %vm520, %v1625, 0
      %1629 = vmatprep.subr.bf16.mxu0 0
      %1630 = vmatpush1.bf16.msra.mxu0 0
      %1631 = vmatprep.subr.bf16.mxu0 0
      %1632 = vmatpush1.bf16.msra.mxu0 0
      %1633 = vmatprep.subr.bf16.mxu0 0
      %1634 = vmatpush1.bf16.msra.mxu0 0
      %1635 = vmatprep.subr.bf16.mxu0 0
      %1636 = vmatpush1.bf16.msra.mxu0 0
      %1637 = vmatprep.subr.bf16.mxu0 0
      %1638 = vmatpush1.bf16.msra.mxu0 0
      %1639 = vmatprep.subr.bf16.mxu0 0
      %1640 = vmatpush1.bf16.msra.mxu0 0
      %1641 = vmatprep.subr.bf16.mxu0 0
      %1642 = vmatpush1.bf16.msra.mxu0 0
      %1643 = vmatprep.subr.bf16.mxu0 %v1610
      %1644 = vmatpush1.bf16.msra.mxu0 %v1609
      %1645 = vmatprep.subr.bf16.mxu0 0
      %1646 = vmatpush2.bf16.msra.mxu0 0
      %1647 = vmatprep.subr.bf16.mxu0 0
      %1648 = vmatpush2.bf16.msra.mxu0 0
      %1649 = vmatprep.subr.bf16.mxu0 0
      %1650 = vmatpush2.bf16.msra.mxu0 0
      %1651 = vmatprep.subr.bf16.mxu0 0
      %1652 = vmatpush2.bf16.msra.mxu0 0
      %1653 = vmatprep.subr.bf16.mxu0 0
      %1654 = vmatpush2.bf16.msra.mxu0 0
      %1655 = vmatprep.subr.bf16.mxu0 0
      %1656 = vmatpush2.bf16.msra.mxu0 0
      %1657 = vmatprep.subr.bf16.mxu0 0
      %1658 = vmatpush2.bf16.msra.mxu0 0
      %1659 = vmatprep.subr.bf16.mxu0 0
      %1660 = vmatpush2.bf16.msra.mxu0 0
      %1661 = vmatprep.mubr.bf16.mxu0 0
      %1662 = vmatmul.mubr.bf16.gmra.mxu0 %v1627
      %v1663 = vpop.f32.mrf.mxu0
      %v1664 = vadd.f32 %v1614, %v1663
      %v1665 = vpop.f32.mrf.mxu0
      %v1666 = vadd.f32 %v1614, %v1665
      %v1667 = vpop.f32.mrf.mxu0
      %v1668 = vadd.f32 %v1619, %v1667
      %v1669 = vpop.f32.mrf.mxu0
      %v1670 = vadd.f32 %v1619, %v1669
      %1671 = vdwg.mxu0
      %v1672 = vmax.f32 %v1664, 0.0
      %v1673 = vmax.f32 %v1666, 0.0
      %v1674 = vmax.f32 %v1668, 0.0
      %v1675 = vmax.f32 %v1670, 0.0
      %v1676 = vld [vmem:[%s369] sm:$0xff]
      %v1677 = vld [vmem:[%s369 + $0x8] sm:$0xff]
      %v1678 = vld [vmem:[%s369 + $0x10] sm:$0xff]
      %v1679 = vld [vmem:[%s369 + $0x18] sm:$0xff]
      %1680 = vst [vmem:[%s379] sm:$0xff] %v1676
      %1681 = vst [vmem:[%s379 + $0x8] sm:$0xff] %v1677
      %1682 = vst [vmem:[%s379 + $0x10] sm:$0xff] %v1672
      %1683 = vst [vmem:[%s379 + $0x18] sm:$0xff] %v1673
      %1684 = vst [vmem:[%s379 + $0x20] sm:$0xff] %v1678
      %1685 = vst [vmem:[%s379 + $0x28] sm:$0xff] %v1679
      %1686 = vst [vmem:[%s379 + $0x30] sm:$0xff] %v1674
      %1687 = vst [vmem:[%s379 + $0x38] sm:$0xff] %v1675
      %p1688 = scmp.lt.s32.totalorder %s21, 1
      %s1689 = scalar_select %p1688, %s21, 1
      %s1690 = smul.addr %s1689, 8
      %s1691 = smul.addr %s1690, 8
      %s1692 = scalar_lea.vmem %s10, %s1691
      // Predicated region
      $region61: #{inverted_residual_forward.1} parent=59 // pred_check
        %p1693 = pneg %p259
      $region62: #{inverted_residual_forward.1} parent=59 // pred_check_branch
        %1695 = sbr.rel (%p1693) target = $region64
      $region63: #{inverted_residual_forward.1} parent=59 // pred_region
        _
      $region64: #{inverted_residual_forward.1} parent=59 // pred_fallthru
        _
    $region60: #{inverted_residual_forward.1} parent=5 // pred_fallthru
      _
    %p1696 = scmp.le.s32.totalorder 2, %s16
    // Predicated region
    $region65: #{inverted_residual_forward.1} parent=5 // pred_check
      %p1697 = pneg %p1696
    $region66: #{inverted_residual_forward.1} parent=5 // pred_check_branch
      %1699 = sbr.rel (%p1697) target = $region68
    $region67: #{inverted_residual_forward.1} parent=5 // pred_region
      %s1700 = ssub.s32 %s16, 2
      // Predicated region
      $region69: #{inverted_residual_forward.1} parent=67 // pred_check
        %p1701 = pneg %p265
      $region70: #{inverted_residual_forward.1} parent=67 // pred_check_branch
        %1703 = sbr.rel (%p1701) target = $region72
      $region71: #{inverted_residual_forward.1} parent=67 // pred_region
        %p1704 = scmp.lt.s32.totalorder %s22, 1
        %s1705 = scalar_select %p1704, %s22, 1
        %s1706 = smul.addr %s1705, 8
        %s1707 = smul.addr %s1706, 8
        %s1708 = scalar_lea.vmem %s10, %s1707
      $region72: #{inverted_residual_forward.1} parent=67 // pred_fallthru
        _
    $region68: #{inverted_residual_forward.1} parent=5 // pred_fallthru
      _
  $region6: #{inverted_residual_forward.1} parent=0 // loop_footer
    %s20 = sadd.s32 1, %s16
  $region7: #{inverted_residual_forward.1} parent=0 // loop_footer_branch
    %15 = sbr.rel target = $region3
  $region8: #{inverted_residual_forward.1} parent=0 // loop_exit
    _

</llo_original>
